<compile_context>
chip_gen: v5e
topology: v5e:2x2
jax: 0.10.0
libtpu: 0.0.40
codegen_flags: <defaults>
</compile_context>

<pallas_src>
import math
from functools import partial

import jax
import jax.numpy as jnp
from jax import lax
from jax.experimental import pallas as pl
from jax.experimental.pallas import tpu as pltpu

# ---- Mamba hyper-parameters (mamba_ssm defaults, small d_model) -------------
D_MODEL = 32
EXPAND = 2
D_INNER = EXPAND * D_MODEL            # 64
D_STATE = 16
D_CONV = 4
DT_RANK = math.ceil(D_MODEL / 16)     # 2

B_SIZE = 2
SEQ_LEN = 8

# per-direction weight-slab row layout (last dim = D_INNER; multi-row blocks 8-aligned)
ROW_CONVW = 0                          # rows 0..3   : conv1d taps k = 0..3
ROW_CONVB = 4                          # row  4      : conv1d bias
ROW_DTB = 5                            # row  5      : dt_proj bias
ROW_DSKIP = 6                          # row  6      : D skip   (row 7 = zero pad)
ROW_WDT = 8                            # rows 8..71  : folded x_proj->dt_proj weight
ROW_XPBC = 72                          # rows 72..103: x_proj B|C rows
ROW_NEGA = 104                         # rows 104..119: -exp(A_log).T
SLAB_ROWS = 120


# ---------------------------- Pallas kernel ----------------------------------
def bimamba_kernel(x_ref, in_w_ref, slab_ref, out_w_ref, o_ref, *, B, L, strategy):
    BL = B * L

    # tied in_proj, computed ONCE for both directions (flip commutes with the
    # row-wise matmul, so the reverse branch reuses the same xz rows).
    x = x_ref[...]                                                     # (B*L, D_MODEL)
    xz = jnp.dot(x, in_w_ref[...], preferred_element_type=jnp.float32)  # (B*L, 2*d_inner)
    xc = xz[:, :D_INNER]                                               # conv branch
    z = xz[:, D_INNER:]                                                # gate branch

    def lane_pack(rows):  # (B*L, D_INNER) -> (L, B*D_INNER): lanes = (batch, channel)
        return jnp.concatenate([rows[b * L:(b + 1) * L, :] for b in range(B)], axis=1)

    z_pack = lane_pack(z)
    silu_z = z_pack * jax.nn.sigmoid(z_pack)      # gate; identical for both directions

    # local sequence position of every flattened row (conv masks must not cross batches)
    pos = lax.broadcasted_iota(jnp.int32, (L, D_INNER), 0)
    pos = jnp.concatenate([pos] * B, axis=0)                           # (B*L, D_INNER)

    y_gated = []
    for d in range(2):  # 0 = forward Mamba, 1 = reverse Mamba (== flip o mamba o flip)
        conv_b = slab_ref[d, ROW_CONVB:ROW_CONVB + 1, :]
        dt_b = slab_ref[d, ROW_DTB:ROW_DTB + 1, :]
        d_skip = slab_ref[d, ROW_DSKIP:ROW_DSKIP + 1, :]
        w_dt = slab_ref[d, ROW_WDT:ROW_WDT + D_INNER, :]               # (d_inner, d_inner)
        xp_bc = slab_ref[d, ROW_XPBC:ROW_XPBC + 2 * D_STATE, :]        # (2*d_state, d_inner)
        neg_a = slab_ref[d, ROW_NEGA:ROW_NEGA + D_STATE, :]            # (d_state, d_inner)

        # depthwise conv1d: causal for fwd, ANTI-causal for rev (which together with
        # the backward scan below is exactly flip -> causal mamba -> flip).
        acc = jnp.zeros((BL, D_INNER), jnp.float32)
        for k in range(D_CONV):
            s = D_CONV - 1 - k
            tap = slab_ref[d, ROW_CONVW + k:ROW_CONVW + k + 1, :]      # (1, d_inner)
            if s == 0:
                xs = xc
            elif d == 0:
                xs = jnp.where(pos >= s, pltpu.roll(xc, s, axis=0), 0.0)
            else:
                xs = jnp.where(pos < L - s, pltpu.roll(xc, BL - s, axis=0), 0.0)
            acc = acc + xs * tap
        acc = acc + conv_b
        xconv = acc * jax.nn.sigmoid(acc)                              # SiLU, (B*L, d_inner)

        # folded x_proj -> dt_proj (exact algebra) and the B|C rows, both MXU matmuls.
        dt = jax.nn.softplus(
            jnp.dot(xconv, w_dt, preferred_element_type=jnp.float32) + dt_b)
        bcT = lax.dot_general(xp_bc, xconv, (((1,), (1,)), ((), ())),
                              preferred_element_type=jnp.float32)      # (2*d_state, B*L)

        # precompute per-step scan operands in lane-dense (d_state, B*d_inner) layout
        xconv_pack = lane_pack(xconv)                                  # (L, B*d_inner)
        dt_pack = lane_pack(dt)
        dtx_pack = dt_pack * xconv_pack
        a_pack = jnp.concatenate([neg_a] * B, axis=1)                  # (d_state, B*d_inner)

        dA_t, dBx_t, c_t = [], [], []
        for t in range(L):
            dA_t.append(jnp.exp(dt_pack[t:t + 1, :] * a_pack))         # (d_state, B*d_inner)
            b_bc = jnp.concatenate(
                [jnp.broadcast_to(bcT[:D_STATE, b * L + t:b * L + t + 1],
                                  (D_STATE, D_INNER)) for b in range(B)], axis=1)
            c_bc = jnp.concatenate(
                [jnp.broadcast_to(bcT[D_STATE:, b * L + t:b * L + t + 1],
                                  (D_STATE, D_INNER)) for b in range(B)], axis=1)
            dBx_t.append(b_bc * dtx_pack[t:t + 1, :])
            c_t.append(c_bc)

        # selective scan: fwd runs t = 0..L-1, rev runs t = L-1..0; the serial chain
        # is only a vmul + vadd per step on a (16, 128) register-resident state.
        order = range(L) if d == 0 else range(L - 1, -1, -1)
        h = jnp.zeros((D_STATE, B * D_INNER), jnp.float32)
        ys = [None] * L
        for t in order:
            h = dA_t[t] * h + dBx_t[t]
            ys[t] = jnp.sum(c_t[t] * h, axis=0, keepdims=True)         # (1, B*d_inner)
        y = jnp.concatenate(ys, axis=0)                                # (L, B*d_inner)

        # skip connection + gating (the gate is z[t] in original time order for BOTH dirs)
        y = y + jnp.concatenate([d_skip] * B, axis=1) * xconv_pack
        y_gated.append(y * silu_z)

    def lane_unpack(packed):  # (L, B*D_INNER) -> (B*L, D_INNER)
        return jnp.concatenate(
            [packed[:, b * D_INNER:(b + 1) * D_INNER] for b in range(B)], axis=0)

    out_w = out_w_ref[...]
    if strategy == "add":
        # tied out_proj + 'add' combine -> a single matmul on the summed gated activations
        o_ref[...] = jnp.dot(lane_unpack(y_gated[0] + y_gated[1]), out_w,
                             preferred_element_type=jnp.float32)
    else:  # "ew_multiply": the two out_proj results are needed separately
        o_fwd = jnp.dot(lane_unpack(y_gated[0]), out_w, preferred_element_type=jnp.float32)
        o_rev = jnp.dot(lane_unpack(y_gated[1]), out_w, preferred_element_type=jnp.float32)
        o_ref[...] = o_fwd * o_rev


# ----------------------------- wrapper ---------------------------------------
def _pack_dir_slab(p):
    """Pack one direction's Mamba weights into a single (SLAB_ROWS, D_INNER) slab."""
    w_dt = p["x_proj_w"][:DT_RANK].T @ p["dt_proj_w"].T               # (d_inner, d_inner)
    rows = [
        p["conv1d_w"][:, 0, :].T,                                     # rows 0..3
        p["conv1d_b"][None, :],                                       # row 4
        p["dt_proj_b"][None, :],                                      # row 5
        p["D"][None, :],                                              # row 6
        jnp.zeros((1, D_INNER), jnp.float32),                         # row 7 (pad)
        w_dt,                                                         # rows 8..71
        p["x_proj_w"][DT_RANK:],                                      # rows 72..103
        -jnp.exp(p["A_log"]).T,                                       # rows 104..119
    ]
    return jnp.concatenate(rows, axis=0).astype(jnp.float32)


def bimamba_forward(hidden_states, fwd_p, rev_p, strategy="add"):
    """BiMambaWrapper.forward: (B, L, D) -> (B, L, D), fully fused in one pallas_call.

    Assumes bidirectional_weight_tie=True (module default): in_proj / out_proj are
    shared between the two directions.
    """
    if strategy not in ("add", "ew_multiply"):
        raise NotImplementedError(strategy)
    B, L, D = hidden_states.shape

    in_w = fwd_p["in_proj_w"].T.astype(jnp.float32)                   # (D, 2*d_inner)
    out_w = fwd_p["out_proj_w"].T.astype(jnp.float32)                 # (d_inner, D)
    slab = jnp.stack([_pack_dir_slab(fwd_p), _pack_dir_slab(rev_p)], axis=0)  # (2,120,64)
    x_flat = hidden_states.reshape(B * L, D).astype(jnp.float32)

    vmem = pl.BlockSpec(memory_space=pltpu.MemorySpace.VMEM)
    out = pl.pallas_call(
        partial(bimamba_kernel, B=B, L=L, strategy=strategy),
        out_shape=jax.ShapeDtypeStruct((B * L, D), jnp.float32),
        in_specs=[vmem, vmem, vmem, vmem],
        out_specs=vmem,
        cost_estimate=pl.CostEstimate(flops=830_000, transcendentals=41_000,
                                      bytes_accessed=92_000),
    )(x_flat, in_w, slab, out_w)
    return out.reshape(B, L, D)


# ----------------------- deterministic parameter init -------------------------
def init_mamba_params(key):
    ks = jax.random.split(key, 7)
    return {
        "in_proj_w": (1.0 / math.sqrt(D_MODEL)) *
                     jax.random.normal(ks[0], (2 * D_INNER, D_MODEL), jnp.float32),
        "conv1d_w": 0.3 * jax.random.normal(ks[1], (D_INNER, 1, D_CONV), jnp.float32),
        "conv1d_b": 0.1 * jax.random.normal(ks[2], (D_INNER,), jnp.float32),
        "x_proj_w": (1.0 / math.sqrt(D_INNER)) *
                    jax.random.normal(ks[3], (DT_RANK + 2 * D_STATE, D_INNER), jnp.float32),
        "dt_proj_w": (1.0 / math.sqrt(DT_RANK)) *
                     jax.random.normal(ks[4], (D_INNER, DT_RANK), jnp.float32),
        "dt_proj_b": jnp.log(jnp.expm1(
            0.001 + 0.099 * jax.random.uniform(ks[5], (D_INNER,), jnp.float32))),
        "A_log": jnp.log(jnp.broadcast_to(
            jnp.arange(1, D_STATE + 1, dtype=jnp.float32), (D_INNER, D_STATE))),
        "D": jnp.ones((D_INNER,), jnp.float32),
        "out_proj_w": (1.0 / math.sqrt(D_INNER)) *
                      jax.random.normal(ks[6], (D_MODEL, D_INNER), jnp.float32),
    }


# ----------------------------- pure-JAX reference -----------------------------
def mamba_ref(x, p):
    B, L, _ = x.shape
    xz = x @ p["in_proj_w"].T
    xc, z = xz[..., :D_INNER], xz[..., D_INNER:]
    w = p["conv1d_w"][:, 0, :]                                        # (d_inner, d_conv)
    xpad = jnp.pad(xc, ((0, 0), (D_CONV - 1, 0), (0, 0)))
    conv = sum(xpad[:, k:k + L, :] * w[:, k] for k in range(D_CONV)) + p["conv1d_b"]
    xconv = conv * jax.nn.sigmoid(conv)
    x_dbl = xconv @ p["x_proj_w"].T
    dt_low = x_dbl[..., :DT_RANK]
    Bm = x_dbl[..., DT_RANK:DT_RANK + D_STATE]
    Cm = x_dbl[..., DT_RANK + D_STATE:]
    dt = jax.nn.softplus(dt_low @ p["dt_proj_w"].T + p["dt_proj_b"])
    A = -jnp.exp(p["A_log"])

    def step(h, ins):
        dt_t, b_t, c_t, x_t = ins
        dA = jnp.exp(dt_t[..., None] * A)
        dBx = dt_t[..., None] * b_t[:, None, :] * x_t[..., None]
        h = dA * h + dBx
        return h, jnp.einsum("bcs,bs->bc", h, c_t)

    h0 = jnp.zeros((B, D_INNER, D_STATE), jnp.float32)
    _, ys = lax.scan(step, h0, (jnp.swapaxes(dt, 0, 1), jnp.swapaxes(Bm, 0, 1),
                                jnp.swapaxes(Cm, 0, 1), jnp.swapaxes(xconv, 0, 1)))
    y = jnp.swapaxes(ys, 0, 1) + p["D"] * xconv
    y = y * (z * jax.nn.sigmoid(z))
    return y @ p["out_proj_w"].T


def bimamba_ref(x, fwd_p, rev_p):
    return mamba_ref(x, fwd_p) + jnp.flip(mamba_ref(jnp.flip(x, axis=1), rev_p), axis=1)


# --------------------------------- main ---------------------------------------
if __name__ == "__main__":
    key = jax.random.PRNGKey(0)
    kx, kf, kr = jax.random.split(key, 3)

    hidden_states = jax.random.normal(kx, (B_SIZE, SEQ_LEN, D_MODEL), jnp.float32)

    fwd_params = init_mamba_params(kf)
    rev_params = init_mamba_params(kr)
    # bidirectional_weight_tie=True: reverse block shares fwd's in_proj / out_proj
    rev_params["in_proj_w"] = fwd_params["in_proj_w"]
    rev_params["out_proj_w"] = fwd_params["out_proj_w"]

    out = bimamba_forward(hidden_states, fwd_params, rev_params, strategy="add")
    out = jax.block_until_ready(out)

    ref = bimamba_ref(hidden_states, fwd_params, rev_params)
    assert out.shape == hidden_states.shape
    max_err = float(jnp.max(jnp.abs(out - ref)))
    assert jnp.allclose(out, ref, rtol=2e-2, atol=2e-2), f"max abs err = {max_err}"

    print("KERNEL_OK")
</pallas_src>

<mosaic_0001>
module attributes {stable_mosaic.version = 11 : i64} {
  func.func @bimamba_kernel(%arg0: memref<16x32xf32, #tpu.memory_space<vmem>>, %arg1: memref<32x128xf32, #tpu.memory_space<vmem>>, %arg2: memref<2x120x64xf32, #tpu.memory_space<vmem>>, %arg3: memref<64x32xf32, #tpu.memory_space<vmem>>, %arg4: memref<16x32xf32, #tpu.memory_space<vmem>>) attributes {dimension_semantics = [], scalar_prefetch = 0 : i64, scratch_operands = 0 : i64, tpu.core_type = #tpu.core_type<tc>} {
    %c0 = arith.constant 0 : index
    %c0_0 = arith.constant 0 : index
    %0 = vector.load %arg0[%c0, %c0_0] : memref<16x32xf32, #tpu.memory_space<vmem>>, vector<16x32xf32>
    %c0_1 = arith.constant 0 : index
    %c0_2 = arith.constant 0 : index
    %1 = vector.load %arg1[%c0_1, %c0_2] : memref<32x128xf32, #tpu.memory_space<vmem>>, vector<32x128xf32>
    %cst = arith.constant dense<0.000000e+00> : vector<16x128xf32>
    %2 = tpu.matmul %0, %1, %cst {dimension_numbers = #tpu.dot_dimension_numbers<[1], [0], [0], [1], [0, 0, 1, 1], [], []>} : vector<16x32xf32>, vector<32x128xf32>, vector<16x128xf32> -> vector<16x128xf32>
    %3 = vector.extract_strided_slice %2 {offsets = [0, 0], sizes = [16, 64], strides = [1, 1]} : vector<16x128xf32> to vector<16x64xf32>
    %4 = vector.extract_strided_slice %2 {offsets = [0, 64], sizes = [16, 64], strides = [1, 1]} : vector<16x128xf32> to vector<16x64xf32>
    %5 = vector.extract_strided_slice %4 {offsets = [0, 0], sizes = [8, 64], strides = [1, 1]} : vector<16x64xf32> to vector<8x64xf32>
    %6 = vector.extract_strided_slice %4 {offsets = [8, 0], sizes = [8, 64], strides = [1, 1]} : vector<16x64xf32> to vector<8x64xf32>
    %7 = tpu.concatenate %5, %6 in 1 : vector<8x64xf32>, vector<8x64xf32> -> vector<8x128xf32>
    %8 = arith.negf %7 : vector<8x128xf32>
    %9 = math.exp %8 : vector<8x128xf32>
    %cst_3 = arith.constant 1.000000e+00 : f32
    %10 = vector.broadcast %cst_3 : f32 to vector<8x128xf32>
    %11 = arith.addf %10, %9 : vector<8x128xf32>
    %12 = arith.divf %10, %11 : vector<8x128xf32>
    %13 = arith.mulf %7, %12 : vector<8x128xf32>
    %14 = tpu.iota {dimensions = array<i32: 0>} : vector<8x64xi32>
    %15 = tpu.concatenate %14, %14 in 0 : vector<8x64xi32>, vector<8x64xi32> -> vector<16x64xi32>
    %c0_4 = arith.constant 0 : index
    %c4 = arith.constant 4 : index
    %c0_5 = arith.constant 0 : index
    %16 = vector.load %arg2[%c0_4, %c4, %c0_5] : memref<2x120x64xf32, #tpu.memory_space<vmem>>, vector<1x1x64xf32>
    %17 = vector.shape_cast %16 : vector<1x1x64xf32> to vector<1x64xf32>
    %c0_6 = arith.constant 0 : index
    %c5 = arith.constant 5 : index
    %c0_7 = arith.constant 0 : index
    %18 = vector.load %arg2[%c0_6, %c5, %c0_7] : memref<2x120x64xf32, #tpu.memory_space<vmem>>, vector<1x1x64xf32>
    %19 = vector.shape_cast %18 : vector<1x1x64xf32> to vector<1x64xf32>
    %c0_8 = arith.constant 0 : index
    %c6 = arith.constant 6 : index
    %c0_9 = arith.constant 0 : index
    %20 = vector.load %arg2[%c0_8, %c6, %c0_9] : memref<2x120x64xf32, #tpu.memory_space<vmem>>, vector<1x1x64xf32>
    %21 = vector.shape_cast %20 : vector<1x1x64xf32> to vector<1x64xf32>
    %c0_10 = arith.constant 0 : index
    %c8 = arith.constant 8 : index
    %c0_11 = arith.constant 0 : index
    %22 = vector.load %arg2[%c0_10, %c8, %c0_11] : memref<2x120x64xf32, #tpu.memory_space<vmem>>, vector<1x64x64xf32>
    %23 = vector.shape_cast %22 : vector<1x64x64xf32> to vector<64x64xf32>
    %c0_12 = arith.constant 0 : index
    %c72 = arith.constant 72 : index
    %c0_13 = arith.constant 0 : index
    %24 = vector.load %arg2[%c0_12, %c72, %c0_13] : memref<2x120x64xf32, #tpu.memory_space<vmem>>, vector<1x32x64xf32>
    %25 = vector.shape_cast %24 : vector<1x32x64xf32> to vector<32x64xf32>
    %c0_14 = arith.constant 0 : index
    %c104 = arith.constant 104 : index
    %c0_15 = arith.constant 0 : index
    %26 = vector.load %arg2[%c0_14, %c104, %c0_15] : memref<2x120x64xf32, #tpu.memory_space<vmem>>, vector<1x16x64xf32>
    %27 = vector.shape_cast %26 : vector<1x16x64xf32> to vector<16x64xf32>
    %cst_16 = arith.constant 0.000000e+00 : f32
    %28 = vector.broadcast %cst_16 : f32 to vector<16x64xf32>
    %c0_17 = arith.constant 0 : index
    %c0_18 = arith.constant 0 : index
    %c0_19 = arith.constant 0 : index
    %29 = vector.load %arg2[%c0_17, %c0_18, %c0_19] : memref<2x120x64xf32, #tpu.memory_space<vmem>>, vector<1x1x64xf32>
    %30 = vector.shape_cast %29 : vector<1x1x64xf32> to vector<1x64xf32>
    %c3_i32 = arith.constant 3 : i32
    %31 = vector.broadcast %c3_i32 : i32 to vector<16x64xi32>
    %32 = arith.cmpi sge, %15, %31 : vector<16x64xi32>
    %c3_i32_20 = arith.constant 3 : i32
    %33 = tpu.dynamic_rotate %3 by %c3_i32_20 dim 0 : vector<16x64xf32>, i32 -> vector<16x64xf32>
    %cst_21 = arith.constant 0.000000e+00 : f32
    %34 = vector.broadcast %cst_21 : f32 to vector<16x64xf32>
    %35 = arith.select %32, %33, %34 : vector<16x64xi1>, vector<16x64xf32>
    %36 = vector.broadcast %30 : vector<1x64xf32> to vector<16x64xf32>
    %37 = arith.mulf %35, %36 : vector<16x64xf32>
    %38 = arith.addf %28, %37 : vector<16x64xf32>
    %c0_22 = arith.constant 0 : index
    %c1 = arith.constant 1 : index
    %c0_23 = arith.constant 0 : index
    %39 = vector.load %arg2[%c0_22, %c1, %c0_23] : memref<2x120x64xf32, #tpu.memory_space<vmem>>, vector<1x1x64xf32>
    %40 = vector.shape_cast %39 : vector<1x1x64xf32> to vector<1x64xf32>
    %c2_i32 = arith.constant 2 : i32
    %41 = vector.broadcast %c2_i32 : i32 to vector<16x64xi32>
    %42 = arith.cmpi sge, %15, %41 : vector<16x64xi32>
    %c2_i32_24 = arith.constant 2 : i32
    %43 = tpu.dynamic_rotate %3 by %c2_i32_24 dim 0 : vector<16x64xf32>, i32 -> vector<16x64xf32>
    %cst_25 = arith.constant 0.000000e+00 : f32
    %44 = vector.broadcast %cst_25 : f32 to vector<16x64xf32>
    %45 = arith.select %42, %43, %44 : vector<16x64xi1>, vector<16x64xf32>
    %46 = vector.broadcast %40 : vector<1x64xf32> to vector<16x64xf32>
    %47 = arith.mulf %45, %46 : vector<16x64xf32>
    %48 = arith.addf %38, %47 : vector<16x64xf32>
    %c0_26 = arith.constant 0 : index
    %c2 = arith.constant 2 : index
    %c0_27 = arith.constant 0 : index
    %49 = vector.load %arg2[%c0_26, %c2, %c0_27] : memref<2x120x64xf32, #tpu.memory_space<vmem>>, vector<1x1x64xf32>
    %50 = vector.shape_cast %49 : vector<1x1x64xf32> to vector<1x64xf32>
    %c1_i32 = arith.constant 1 : i32
    %51 = vector.broadcast %c1_i32 : i32 to vector<16x64xi32>
    %52 = arith.cmpi sge, %15, %51 : vector<16x64xi32>
    %c1_i32_28 = arith.constant 1 : i32
    %53 = tpu.dynamic_rotate %3 by %c1_i32_28 dim 0 : vector<16x64xf32>, i32 -> vector<16x64xf32>
    %cst_29 = arith.constant 0.000000e+00 : f32
    %54 = vector.broadcast %cst_29 : f32 to vector<16x64xf32>
    %55 = arith.select %52, %53, %54 : vector<16x64xi1>, vector<16x64xf32>
    %56 = vector.broadcast %50 : vector<1x64xf32> to vector<16x64xf32>
    %57 = arith.mulf %55, %56 : vector<16x64xf32>
    %58 = arith.addf %48, %57 : vector<16x64xf32>
    %c0_30 = arith.constant 0 : index
    %c3 = arith.constant 3 : index
    %c0_31 = arith.constant 0 : index
    %59 = vector.load %arg2[%c0_30, %c3, %c0_31] : memref<2x120x64xf32, #tpu.memory_space<vmem>>, vector<1x1x64xf32>
    %60 = vector.shape_cast %59 : vector<1x1x64xf32> to vector<1x64xf32>
    %61 = vector.broadcast %60 : vector<1x64xf32> to vector<16x64xf32>
    %62 = arith.mulf %3, %61 : vector<16x64xf32>
    %63 = arith.addf %58, %62 : vector<16x64xf32>
    %64 = vector.broadcast %17 : vector<1x64xf32> to vector<16x64xf32>
    %65 = arith.addf %63, %64 : vector<16x64xf32>
    %66 = arith.negf %65 : vector<16x64xf32>
    %67 = math.exp %66 : vector<16x64xf32>
    %cst_32 = arith.constant 1.000000e+00 : f32
    %68 = vector.broadcast %cst_32 : f32 to vector<16x64xf32>
    %69 = arith.addf %68, %67 : vector<16x64xf32>
    %70 = arith.divf %68, %69 : vector<16x64xf32>
    %71 = arith.mulf %65, %70 : vector<16x64xf32>
    %cst_33 = arith.constant dense<0.000000e+00> : vector<16x64xf32>
    %72 = tpu.matmul %71, %23, %cst_33 {dimension_numbers = #tpu.dot_dimension_numbers<[1], [0], [0], [1], [0, 0, 1, 1], [], []>} : vector<16x64xf32>, vector<64x64xf32>, vector<16x64xf32> -> vector<16x64xf32>
    %73 = vector.broadcast %19 : vector<1x64xf32> to vector<16x64xf32>
    %74 = arith.addf %72, %73 : vector<16x64xf32>
    %cst_34 = arith.constant 0.000000e+00 : f32
    %75 = vector.broadcast %cst_34 : f32 to vector<16x64xf32>
    %76 = arith.maximumf %74, %75 : vector<16x64xf32>
    %77 = vector.broadcast %cst_34 : f32 to vector<16x64xf32>
    %78 = arith.subf %74, %77 : vector<16x64xf32>
    %79 = arith.cmpf one, %78, %78 : vector<16x64xf32>
    %80 = vector.broadcast %cst_34 : f32 to vector<16x64xf32>
    %81 = arith.addf %74, %80 : vector<16x64xf32>
    %82 = math.absf %78 : vector<16x64xf32>
    %cst_35 = arith.constant 0.000000e+00 : f32
    %83 = vector.broadcast %cst_35 : f32 to vector<16x64xf32>
    %84 = arith.subf %83, %82 : vector<16x64xf32>
    %85 = math.exp %84 : vector<16x64xf32>
    %86 = math.log1p %85 : vector<16x64xf32>
    %87 = arith.addf %76, %86 : vector<16x64xf32>
    %88 = arith.select %79, %81, %87 : vector<16x64xi1>, vector<16x64xf32>
    %cst_36 = arith.constant dense<0.000000e+00> : vector<32x16xf32>
    %89 = tpu.matmul %25, %71, %cst_36 {dimension_numbers = #tpu.dot_dimension_numbers<[1], [1], [0], [0], [0, 0, 1, 0], [], []>} : vector<32x64xf32>, vector<16x64xf32>, vector<32x16xf32> -> vector<32x16xf32>
    %90 = vector.extract_strided_slice %71 {offsets = [0, 0], sizes = [8, 64], strides = [1, 1]} : vector<16x64xf32> to vector<8x64xf32>
    %91 = vector.extract_strided_slice %71 {offsets = [8, 0], sizes = [8, 64], strides = [1, 1]} : vector<16x64xf32> to vector<8x64xf32>
    %92 = tpu.concatenate %90, %91 in 1 : vector<8x64xf32>, vector<8x64xf32> -> vector<8x128xf32>
    %93 = vector.extract_strided_slice %88 {offsets = [0, 0], sizes = [8, 64], strides = [1, 1]} : vector<16x64xf32> to vector<8x64xf32>
    %94 = vector.extract_strided_slice %88 {offsets = [8, 0], sizes = [8, 64], strides = [1, 1]} : vector<16x64xf32> to vector<8x64xf32>
    %95 = tpu.concatenate %93, %94 in 1 : vector<8x64xf32>, vector<8x64xf32> -> vector<8x128xf32>
    %96 = arith.mulf %95, %92 : vector<8x128xf32>
    %97 = tpu.concatenate %27, %27 in 1 : vector<16x64xf32>, vector<16x64xf32> -> vector<16x128xf32>
    %98 = vector.extract_strided_slice %95 {offsets = [0, 0], sizes = [1, 128], strides = [1, 1]} : vector<8x128xf32> to vector<1x128xf32>
    %99 = vector.broadcast %98 : vector<1x128xf32> to vector<16x128xf32>
    %100 = arith.mulf %99, %97 : vector<16x128xf32>
    %101 = math.exp %100 : vector<16x128xf32>
    %102 = vector.extract_strided_slice %89 {offsets = [0, 0], sizes = [16, 1], strides = [1, 1]} : vector<32x16xf32> to vector<16x1xf32>
    %103 = vector.shape_cast %102 : vector<16x1xf32> to vector<16x1xf32>
    %104 = vector.broadcast %103 : vector<16x1xf32> to vector<16x64xf32>
    %105 = vector.extract_strided_slice %89 {offsets = [0, 8], sizes = [16, 1], strides = [1, 1]} : vector<32x16xf32> to vector<16x1xf32>
    %106 = vector.shape_cast %105 : vector<16x1xf32> to vector<16x1xf32>
    %107 = vector.broadcast %106 : vector<16x1xf32> to vector<16x64xf32>
    %108 = tpu.concatenate %104, %107 in 1 : vector<16x64xf32>, vector<16x64xf32> -> vector<16x128xf32>
    %109 = vector.extract_strided_slice %89 {offsets = [16, 0], sizes = [16, 1], strides = [1, 1]} : vector<32x16xf32> to vector<16x1xf32>
    %110 = vector.shape_cast %109 : vector<16x1xf32> to vector<16x1xf32>
    %111 = vector.broadcast %110 : vector<16x1xf32> to vector<16x64xf32>
    %112 = vector.extract_strided_slice %89 {offsets = [16, 8], sizes = [16, 1], strides = [1, 1]} : vector<32x16xf32> to vector<16x1xf32>
    %113 = vector.shape_cast %112 : vector<16x1xf32> to vector<16x1xf32>
    %114 = vector.broadcast %113 : vector<16x1xf32> to vector<16x64xf32>
    %115 = tpu.concatenate %111, %114 in 1 : vector<16x64xf32>, vector<16x64xf32> -> vector<16x128xf32>
    %116 = vector.extract_strided_slice %96 {offsets = [0, 0], sizes = [1, 128], strides = [1, 1]} : vector<8x128xf32> to vector<1x128xf32>
    %117 = vector.broadcast %116 : vector<1x128xf32> to vector<16x128xf32>
    %118 = arith.mulf %108, %117 : vector<16x128xf32>
    %119 = vector.extract_strided_slice %95 {offsets = [1, 0], sizes = [1, 128], strides = [1, 1]} : vector<8x128xf32> to vector<1x128xf32>
    %120 = vector.broadcast %119 : vector<1x128xf32> to vector<16x128xf32>
    %121 = arith.mulf %120, %97 : vector<16x128xf32>
    %122 = math.exp %121 : vector<16x128xf32>
    %123 = vector.extract_strided_slice %89 {offsets = [0, 1], sizes = [16, 1], strides = [1, 1]} : vector<32x16xf32> to vector<16x1xf32>
    %124 = vector.shape_cast %123 : vector<16x1xf32> to vector<16x1xf32>
    %125 = vector.broadcast %124 : vector<16x1xf32> to vector<16x64xf32>
    %126 = vector.extract_strided_slice %89 {offsets = [0, 9], sizes = [16, 1], strides = [1, 1]} : vector<32x16xf32> to vector<16x1xf32>
    %127 = vector.shape_cast %126 : vector<16x1xf32> to vector<16x1xf32>
    %128 = vector.broadcast %127 : vector<16x1xf32> to vector<16x64xf32>
    %129 = tpu.concatenate %125, %128 in 1 : vector<16x64xf32>, vector<16x64xf32> -> vector<16x128xf32>
    %130 = vector.extract_strided_slice %89 {offsets = [16, 1], sizes = [16, 1], strides = [1, 1]} : vector<32x16xf32> to vector<16x1xf32>
    %131 = vector.shape_cast %130 : vector<16x1xf32> to vector<16x1xf32>
    %132 = vector.broadcast %131 : vector<16x1xf32> to vector<16x64xf32>
    %133 = vector.extract_strided_slice %89 {offsets = [16, 9], sizes = [16, 1], strides = [1, 1]} : vector<32x16xf32> to vector<16x1xf32>
    %134 = vector.shape_cast %133 : vector<16x1xf32> to vector<16x1xf32>
    %135 = vector.broadcast %134 : vector<16x1xf32> to vector<16x64xf32>
    %136 = tpu.concatenate %132, %135 in 1 : vector<16x64xf32>, vector<16x64xf32> -> vector<16x128xf32>
    %137 = vector.extract_strided_slice %96 {offsets = [1, 0], sizes = [1, 128], strides = [1, 1]} : vector<8x128xf32> to vector<1x128xf32>
    %138 = vector.broadcast %137 : vector<1x128xf32> to vector<16x128xf32>
    %139 = arith.mulf %129, %138 : vector<16x128xf32>
    %140 = vector.extract_strided_slice %95 {offsets = [2, 0], sizes = [1, 128], strides = [1, 1]} : vector<8x128xf32> to vector<1x128xf32>
    %141 = vector.broadcast %140 : vector<1x128xf32> to vector<16x128xf32>
    %142 = arith.mulf %141, %97 : vector<16x128xf32>
    %143 = math.exp %142 : vector<16x128xf32>
    %144 = vector.extract_strided_slice %89 {offsets = [0, 2], sizes = [16, 1], strides = [1, 1]} : vector<32x16xf32> to vector<16x1xf32>
    %145 = vector.shape_cast %144 : vector<16x1xf32> to vector<16x1xf32>
    %146 = vector.broadcast %145 : vector<16x1xf32> to vector<16x64xf32>
    %147 = vector.extract_strided_slice %89 {offsets = [0, 10], sizes = [16, 1], strides = [1, 1]} : vector<32x16xf32> to vector<16x1xf32>
    %148 = vector.shape_cast %147 : vector<16x1xf32> to vector<16x1xf32>
    %149 = vector.broadcast %148 : vector<16x1xf32> to vector<16x64xf32>
    %150 = tpu.concatenate %146, %149 in 1 : vector<16x64xf32>, vector<16x64xf32> -> vector<16x128xf32>
    %151 = vector.extract_strided_slice %89 {offsets = [16, 2], sizes = [16, 1], strides = [1, 1]} : vector<32x16xf32> to vector<16x1xf32>
    %152 = vector.shape_cast %151 : vector<16x1xf32> to vector<16x1xf32>
    %153 = vector.broadcast %152 : vector<16x1xf32> to vector<16x64xf32>
    %154 = vector.extract_strided_slice %89 {offsets = [16, 10], sizes = [16, 1], strides = [1, 1]} : vector<32x16xf32> to vector<16x1xf32>
    %155 = vector.shape_cast %154 : vector<16x1xf32> to vector<16x1xf32>
    %156 = vector.broadcast %155 : vector<16x1xf32> to vector<16x64xf32>
    %157 = tpu.concatenate %153, %156 in 1 : vector<16x64xf32>, vector<16x64xf32> -> vector<16x128xf32>
    %158 = vector.extract_strided_slice %96 {offsets = [2, 0], sizes = [1, 128], strides = [1, 1]} : vector<8x128xf32> to vector<1x128xf32>
    %159 = vector.broadcast %158 : vector<1x128xf32> to vector<16x128xf32>
    %160 = arith.mulf %150, %159 : vector<16x128xf32>
    %161 = vector.extract_strided_slice %95 {offsets = [3, 0], sizes = [1, 128], strides = [1, 1]} : vector<8x128xf32> to vector<1x128xf32>
    %162 = vector.broadcast %161 : vector<1x128xf32> to vector<16x128xf32>
    %163 = arith.mulf %162, %97 : vector<16x128xf32>
    %164 = math.exp %163 : vector<16x128xf32>
    %165 = vector.extract_strided_slice %89 {offsets = [0, 3], sizes = [16, 1], strides = [1, 1]} : vector<32x16xf32> to vector<16x1xf32>
    %166 = vector.shape_cast %165 : vector<16x1xf32> to vector<16x1xf32>
    %167 = vector.broadcast %166 : vector<16x1xf32> to vector<16x64xf32>
    %168 = vector.extract_strided_slice %89 {offsets = [0, 11], sizes = [16, 1], strides = [1, 1]} : vector<32x16xf32> to vector<16x1xf32>
    %169 = vector.shape_cast %168 : vector<16x1xf32> to vector<16x1xf32>
    %170 = vector.broadcast %169 : vector<16x1xf32> to vector<16x64xf32>
    %171 = tpu.concatenate %167, %170 in 1 : vector<16x64xf32>, vector<16x64xf32> -> vector<16x128xf32>
    %172 = vector.extract_strided_slice %89 {offsets = [16, 3], sizes = [16, 1], strides = [1, 1]} : vector<32x16xf32> to vector<16x1xf32>
    %173 = vector.shape_cast %172 : vector<16x1xf32> to vector<16x1xf32>
    %174 = vector.broadcast %173 : vector<16x1xf32> to vector<16x64xf32>
    %175 = vector.extract_strided_slice %89 {offsets = [16, 11], sizes = [16, 1], strides = [1, 1]} : vector<32x16xf32> to vector<16x1xf32>
    %176 = vector.shape_cast %175 : vector<16x1xf32> to vector<16x1xf32>
    %177 = vector.broadcast %176 : vector<16x1xf32> to vector<16x64xf32>
    %178 = tpu.concatenate %174, %177 in 1 : vector<16x64xf32>, vector<16x64xf32> -> vector<16x128xf32>
    %179 = vector.extract_strided_slice %96 {offsets = [3, 0], sizes = [1, 128], strides = [1, 1]} : vector<8x128xf32> to vector<1x128xf32>
    %180 = vector.broadcast %179 : vector<1x128xf32> to vector<16x128xf32>
    %181 = arith.mulf %171, %180 : vector<16x128xf32>
    %182 = vector.extract_strided_slice %95 {offsets = [4, 0], sizes = [1, 128], strides = [1, 1]} : vector<8x128xf32> to vector<1x128xf32>
    %183 = vector.broadcast %182 : vector<1x128xf32> to vector<16x128xf32>
    %184 = arith.mulf %183, %97 : vector<16x128xf32>
    %185 = math.exp %184 : vector<16x128xf32>
    %186 = vector.extract_strided_slice %89 {offsets = [0, 4], sizes = [16, 1], strides = [1, 1]} : vector<32x16xf32> to vector<16x1xf32>
    %187 = vector.shape_cast %186 : vector<16x1xf32> to vector<16x1xf32>
    %188 = vector.broadcast %187 : vector<16x1xf32> to vector<16x64xf32>
    %189 = vector.extract_strided_slice %89 {offsets = [0, 12], sizes = [16, 1], strides = [1, 1]} : vector<32x16xf32> to vector<16x1xf32>
    %190 = vector.shape_cast %189 : vector<16x1xf32> to vector<16x1xf32>
    %191 = vector.broadcast %190 : vector<16x1xf32> to vector<16x64xf32>
    %192 = tpu.concatenate %188, %191 in 1 : vector<16x64xf32>, vector<16x64xf32> -> vector<16x128xf32>
    %193 = vector.extract_strided_slice %89 {offsets = [16, 4], sizes = [16, 1], strides = [1, 1]} : vector<32x16xf32> to vector<16x1xf32>
    %194 = vector.shape_cast %193 : vector<16x1xf32> to vector<16x1xf32>
    %195 = vector.broadcast %194 : vector<16x1xf32> to vector<16x64xf32>
    %196 = vector.extract_strided_slice %89 {offsets = [16, 12], sizes = [16, 1], strides = [1, 1]} : vector<32x16xf32> to vector<16x1xf32>
    %197 = vector.shape_cast %196 : vector<16x1xf32> to vector<16x1xf32>
    %198 = vector.broadcast %197 : vector<16x1xf32> to vector<16x64xf32>
    %199 = tpu.concatenate %195, %198 in 1 : vector<16x64xf32>, vector<16x64xf32> -> vector<16x128xf32>
    %200 = vector.extract_strided_slice %96 {offsets = [4, 0], sizes = [1, 128], strides = [1, 1]} : vector<8x128xf32> to vector<1x128xf32>
    %201 = vector.broadcast %200 : vector<1x128xf32> to vector<16x128xf32>
    %202 = arith.mulf %192, %201 : vector<16x128xf32>
    %203 = vector.extract_strided_slice %95 {offsets = [5, 0], sizes = [1, 128], strides = [1, 1]} : vector<8x128xf32> to vector<1x128xf32>
    %204 = vector.broadcast %203 : vector<1x128xf32> to vector<16x128xf32>
    %205 = arith.mulf %204, %97 : vector<16x128xf32>
    %206 = math.exp %205 : vector<16x128xf32>
    %207 = vector.extract_strided_slice %89 {offsets = [0, 5], sizes = [16, 1], strides = [1, 1]} : vector<32x16xf32> to vector<16x1xf32>
    %208 = vector.shape_cast %207 : vector<16x1xf32> to vector<16x1xf32>
    %209 = vector.broadcast %208 : vector<16x1xf32> to vector<16x64xf32>
    %210 = vector.extract_strided_slice %89 {offsets = [0, 13], sizes = [16, 1], strides = [1, 1]} : vector<32x16xf32> to vector<16x1xf32>
    %211 = vector.shape_cast %210 : vector<16x1xf32> to vector<16x1xf32>
    %212 = vector.broadcast %211 : vector<16x1xf32> to vector<16x64xf32>
    %213 = tpu.concatenate %209, %212 in 1 : vector<16x64xf32>, vector<16x64xf32> -> vector<16x128xf32>
    %214 = vector.extract_strided_slice %89 {offsets = [16, 5], sizes = [16, 1], strides = [1, 1]} : vector<32x16xf32> to vector<16x1xf32>
    %215 = vector.shape_cast %214 : vector<16x1xf32> to vector<16x1xf32>
    %216 = vector.broadcast %215 : vector<16x1xf32> to vector<16x64xf32>
    %217 = vector.extract_strided_slice %89 {offsets = [16, 13], sizes = [16, 1], strides = [1, 1]} : vector<32x16xf32> to vector<16x1xf32>
    %218 = vector.shape_cast %217 : vector<16x1xf32> to vector<16x1xf32>
    %219 = vector.broadcast %218 : vector<16x1xf32> to vector<16x64xf32>
    %220 = tpu.concatenate %216, %219 in 1 : vector<16x64xf32>, vector<16x64xf32> -> vector<16x128xf32>
    %221 = vector.extract_strided_slice %96 {offsets = [5, 0], sizes = [1, 128], strides = [1, 1]} : vector<8x128xf32> to vector<1x128xf32>
    %222 = vector.broadcast %221 : vector<1x128xf32> to vector<16x128xf32>
    %223 = arith.mulf %213, %222 : vector<16x128xf32>
    %224 = vector.extract_strided_slice %95 {offsets = [6, 0], sizes = [1, 128], strides = [1, 1]} : vector<8x128xf32> to vector<1x128xf32>
    %225 = vector.broadcast %224 : vector<1x128xf32> to vector<16x128xf32>
    %226 = arith.mulf %225, %97 : vector<16x128xf32>
    %227 = math.exp %226 : vector<16x128xf32>
    %228 = vector.extract_strided_slice %89 {offsets = [0, 6], sizes = [16, 1], strides = [1, 1]} : vector<32x16xf32> to vector<16x1xf32>
    %229 = vector.shape_cast %228 : vector<16x1xf32> to vector<16x1xf32>
    %230 = vector.broadcast %229 : vector<16x1xf32> to vector<16x64xf32>
    %231 = vector.extract_strided_slice %89 {offsets = [0, 14], sizes = [16, 1], strides = [1, 1]} : vector<32x16xf32> to vector<16x1xf32>
    %232 = vector.shape_cast %231 : vector<16x1xf32> to vector<16x1xf32>
    %233 = vector.broadcast %232 : vector<16x1xf32> to vector<16x64xf32>
    %234 = tpu.concatenate %230, %233 in 1 : vector<16x64xf32>, vector<16x64xf32> -> vector<16x128xf32>
    %235 = vector.extract_strided_slice %89 {offsets = [16, 6], sizes = [16, 1], strides = [1, 1]} : vector<32x16xf32> to vector<16x1xf32>
    %236 = vector.shape_cast %235 : vector<16x1xf32> to vector<16x1xf32>
    %237 = vector.broadcast %236 : vector<16x1xf32> to vector<16x64xf32>
    %238 = vector.extract_strided_slice %89 {offsets = [16, 14], sizes = [16, 1], strides = [1, 1]} : vector<32x16xf32> to vector<16x1xf32>
    %239 = vector.shape_cast %238 : vector<16x1xf32> to vector<16x1xf32>
    %240 = vector.broadcast %239 : vector<16x1xf32> to vector<16x64xf32>
    %241 = tpu.concatenate %237, %240 in 1 : vector<16x64xf32>, vector<16x64xf32> -> vector<16x128xf32>
    %242 = vector.extract_strided_slice %96 {offsets = [6, 0], sizes = [1, 128], strides = [1, 1]} : vector<8x128xf32> to vector<1x128xf32>
    %243 = vector.broadcast %242 : vector<1x128xf32> to vector<16x128xf32>
    %244 = arith.mulf %234, %243 : vector<16x128xf32>
    %245 = vector.extract_strided_slice %95 {offsets = [7, 0], sizes = [1, 128], strides = [1, 1]} : vector<8x128xf32> to vector<1x128xf32>
    %246 = vector.broadcast %245 : vector<1x128xf32> to vector<16x128xf32>
    %247 = arith.mulf %246, %97 : vector<16x128xf32>
    %248 = math.exp %247 : vector<16x128xf32>
    %249 = vector.extract_strided_slice %89 {offsets = [0, 7], sizes = [16, 1], strides = [1, 1]} : vector<32x16xf32> to vector<16x1xf32>
    %250 = vector.shape_cast %249 : vector<16x1xf32> to vector<16x1xf32>
    %251 = vector.broadcast %250 : vector<16x1xf32> to vector<16x64xf32>
    %252 = vector.extract_strided_slice %89 {offsets = [0, 15], sizes = [16, 1], strides = [1, 1]} : vector<32x16xf32> to vector<16x1xf32>
    %253 = vector.shape_cast %252 : vector<16x1xf32> to vector<16x1xf32>
    %254 = vector.broadcast %253 : vector<16x1xf32> to vector<16x64xf32>
    %255 = tpu.concatenate %251, %254 in 1 : vector<16x64xf32>, vector<16x64xf32> -> vector<16x128xf32>
    %256 = vector.extract_strided_slice %89 {offsets = [16, 7], sizes = [16, 1], strides = [1, 1]} : vector<32x16xf32> to vector<16x1xf32>
    %257 = vector.shape_cast %256 : vector<16x1xf32> to vector<16x1xf32>
    %258 = vector.broadcast %257 : vector<16x1xf32> to vector<16x64xf32>
    %259 = vector.extract_strided_slice %89 {offsets = [16, 15], sizes = [16, 1], strides = [1, 1]} : vector<32x16xf32> to vector<16x1xf32>
    %260 = vector.shape_cast %259 : vector<16x1xf32> to vector<16x1xf32>
    %261 = vector.broadcast %260 : vector<16x1xf32> to vector<16x64xf32>
    %262 = tpu.concatenate %258, %261 in 1 : vector<16x64xf32>, vector<16x64xf32> -> vector<16x128xf32>
    %263 = vector.extract_strided_slice %96 {offsets = [7, 0], sizes = [1, 128], strides = [1, 1]} : vector<8x128xf32> to vector<1x128xf32>
    %264 = vector.broadcast %263 : vector<1x128xf32> to vector<16x128xf32>
    %265 = arith.mulf %255, %264 : vector<16x128xf32>
    %cst_37 = arith.constant 0.000000e+00 : f32
    %266 = vector.broadcast %cst_37 : f32 to vector<16x128xf32>
    %267 = arith.mulf %101, %266 : vector<16x128xf32>
    %268 = arith.addf %267, %118 : vector<16x128xf32>
    %269 = arith.mulf %115, %268 : vector<16x128xf32>
    %cst_38 = arith.constant dense<0.000000e+00> : vector<128xf32>
    %270 = vector.multi_reduction <add>, %269, %cst_38 [0] : vector<16x128xf32> to vector<128xf32>
    %271 = vector.shape_cast %270 : vector<128xf32> to vector<1x128xf32>
    %272 = arith.mulf %122, %268 : vector<16x128xf32>
    %273 = arith.addf %272, %139 : vector<16x128xf32>
    %274 = arith.mulf %136, %273 : vector<16x128xf32>
    %cst_39 = arith.constant dense<0.000000e+00> : vector<128xf32>
    %275 = vector.multi_reduction <add>, %274, %cst_39 [0] : vector<16x128xf32> to vector<128xf32>
    %276 = vector.shape_cast %275 : vector<128xf32> to vector<1x128xf32>
    %277 = arith.mulf %143, %273 : vector<16x128xf32>
    %278 = arith.addf %277, %160 : vector<16x128xf32>
    %279 = arith.mulf %157, %278 : vector<16x128xf32>
    %cst_40 = arith.constant dense<0.000000e+00> : vector<128xf32>
    %280 = vector.multi_reduction <add>, %279, %cst_40 [0] : vector<16x128xf32> to vector<128xf32>
    %281 = vector.shape_cast %280 : vector<128xf32> to vector<1x128xf32>
    %282 = arith.mulf %164, %278 : vector<16x128xf32>
    %283 = arith.addf %282, %181 : vector<16x128xf32>
    %284 = arith.mulf %178, %283 : vector<16x128xf32>
    %cst_41 = arith.constant dense<0.000000e+00> : vector<128xf32>
    %285 = vector.multi_reduction <add>, %284, %cst_41 [0] : vector<16x128xf32> to vector<128xf32>
    %286 = vector.shape_cast %285 : vector<128xf32> to vector<1x128xf32>
    %287 = arith.mulf %185, %283 : vector<16x128xf32>
    %288 = arith.addf %287, %202 : vector<16x128xf32>
    %289 = arith.mulf %199, %288 : vector<16x128xf32>
    %cst_42 = arith.constant dense<0.000000e+00> : vector<128xf32>
    %290 = vector.multi_reduction <add>, %289, %cst_42 [0] : vector<16x128xf32> to vector<128xf32>
    %291 = vector.shape_cast %290 : vector<128xf32> to vector<1x128xf32>
    %292 = arith.mulf %206, %288 : vector<16x128xf32>
    %293 = arith.addf %292, %223 : vector<16x128xf32>
    %294 = arith.mulf %220, %293 : vector<16x128xf32>
    %cst_43 = arith.constant dense<0.000000e+00> : vector<128xf32>
    %295 = vector.multi_reduction <add>, %294, %cst_43 [0] : vector<16x128xf32> to vector<128xf32>
    %296 = vector.shape_cast %295 : vector<128xf32> to vector<1x128xf32>
    %297 = arith.mulf %227, %293 : vector<16x128xf32>
    %298 = arith.addf %297, %244 : vector<16x128xf32>
    %299 = arith.mulf %241, %298 : vector<16x128xf32>
    %cst_44 = arith.constant dense<0.000000e+00> : vector<128xf32>
    %300 = vector.multi_reduction <add>, %299, %cst_44 [0] : vector<16x128xf32> to vector<128xf32>
    %301 = vector.shape_cast %300 : vector<128xf32> to vector<1x128xf32>
    %302 = arith.mulf %248, %298 : vector<16x128xf32>
    %303 = arith.addf %302, %265 : vector<16x128xf32>
    %304 = arith.mulf %262, %303 : vector<16x128xf32>
    %cst_45 = arith.constant dense<0.000000e+00> : vector<128xf32>
    %305 = vector.multi_reduction <add>, %304, %cst_45 [0] : vector<16x128xf32> to vector<128xf32>
    %306 = vector.shape_cast %305 : vector<128xf32> to vector<1x128xf32>
    %307 = tpu.concatenate %271, %276, %281, %286, %291, %296, %301, %306 in 0 : vector<1x128xf32>, vector<1x128xf32>, vector<1x128xf32>, vector<1x128xf32>, vector<1x128xf32>, vector<1x128xf32>, vector<1x128xf32>, vector<1x128xf32> -> vector<8x128xf32>
    %308 = tpu.concatenate %21, %21 in 1 : vector<1x64xf32>, vector<1x64xf32> -> vector<1x128xf32>
    %309 = vector.broadcast %308 : vector<1x128xf32> to vector<8x128xf32>
    %310 = arith.mulf %309, %92 : vector<8x128xf32>
    %311 = arith.addf %307, %310 : vector<8x128xf32>
    %312 = arith.mulf %311, %13 : vector<8x128xf32>
    %c1_46 = arith.constant 1 : index
    %c4_47 = arith.constant 4 : index
    %c0_48 = arith.constant 0 : index
    %313 = vector.load %arg2[%c1_46, %c4_47, %c0_48] : memref<2x120x64xf32, #tpu.memory_space<vmem>>, vector<1x1x64xf32>
    %314 = vector.shape_cast %313 : vector<1x1x64xf32> to vector<1x64xf32>
    %c1_49 = arith.constant 1 : index
    %c5_50 = arith.constant 5 : index
    %c0_51 = arith.constant 0 : index
    %315 = vector.load %arg2[%c1_49, %c5_50, %c0_51] : memref<2x120x64xf32, #tpu.memory_space<vmem>>, vector<1x1x64xf32>
    %316 = vector.shape_cast %315 : vector<1x1x64xf32> to vector<1x64xf32>
    %c1_52 = arith.constant 1 : index
    %c6_53 = arith.constant 6 : index
    %c0_54 = arith.constant 0 : index
    %317 = vector.load %arg2[%c1_52, %c6_53, %c0_54] : memref<2x120x64xf32, #tpu.memory_space<vmem>>, vector<1x1x64xf32>
    %318 = vector.shape_cast %317 : vector<1x1x64xf32> to vector<1x64xf32>
    %c1_55 = arith.constant 1 : index
    %c8_56 = arith.constant 8 : index
    %c0_57 = arith.constant 0 : index
    %319 = vector.load %arg2[%c1_55, %c8_56, %c0_57] : memref<2x120x64xf32, #tpu.memory_space<vmem>>, vector<1x64x64xf32>
    %320 = vector.shape_cast %319 : vector<1x64x64xf32> to vector<64x64xf32>
    %c1_58 = arith.constant 1 : index
    %c72_59 = arith.constant 72 : index
    %c0_60 = arith.constant 0 : index
    %321 = vector.load %arg2[%c1_58, %c72_59, %c0_60] : memref<2x120x64xf32, #tpu.memory_space<vmem>>, vector<1x32x64xf32>
    %322 = vector.shape_cast %321 : vector<1x32x64xf32> to vector<32x64xf32>
    %c1_61 = arith.constant 1 : index
    %c104_62 = arith.constant 104 : index
    %c0_63 = arith.constant 0 : index
    %323 = vector.load %arg2[%c1_61, %c104_62, %c0_63] : memref<2x120x64xf32, #tpu.memory_space<vmem>>, vector<1x16x64xf32>
    %324 = vector.shape_cast %323 : vector<1x16x64xf32> to vector<16x64xf32>
    %cst_64 = arith.constant 0.000000e+00 : f32
    %325 = vector.broadcast %cst_64 : f32 to vector<16x64xf32>
    %c1_65 = arith.constant 1 : index
    %c0_66 = arith.constant 0 : index
    %c0_67 = arith.constant 0 : index
    %326 = vector.load %arg2[%c1_65, %c0_66, %c0_67] : memref<2x120x64xf32, #tpu.memory_space<vmem>>, vector<1x1x64xf32>
    %327 = vector.shape_cast %326 : vector<1x1x64xf32> to vector<1x64xf32>
    %c5_i32 = arith.constant 5 : i32
    %328 = vector.broadcast %c5_i32 : i32 to vector<16x64xi32>
    %329 = arith.cmpi slt, %15, %328 : vector<16x64xi32>
    %c13_i32 = arith.constant 13 : i32
    %330 = tpu.dynamic_rotate %3 by %c13_i32 dim 0 : vector<16x64xf32>, i32 -> vector<16x64xf32>
    %cst_68 = arith.constant 0.000000e+00 : f32
    %331 = vector.broadcast %cst_68 : f32 to vector<16x64xf32>
    %332 = arith.select %329, %330, %331 : vector<16x64xi1>, vector<16x64xf32>
    %333 = vector.broadcast %327 : vector<1x64xf32> to vector<16x64xf32>
    %334 = arith.mulf %332, %333 : vector<16x64xf32>
    %335 = arith.addf %325, %334 : vector<16x64xf32>
    %c1_69 = arith.constant 1 : index
    %c1_70 = arith.constant 1 : index
    %c0_71 = arith.constant 0 : index
    %336 = vector.load %arg2[%c1_69, %c1_70, %c0_71] : memref<2x120x64xf32, #tpu.memory_space<vmem>>, vector<1x1x64xf32>
    %337 = vector.shape_cast %336 : vector<1x1x64xf32> to vector<1x64xf32>
    %c6_i32 = arith.constant 6 : i32
    %338 = vector.broadcast %c6_i32 : i32 to vector<16x64xi32>
    %339 = arith.cmpi slt, %15, %338 : vector<16x64xi32>
    %c14_i32 = arith.constant 14 : i32
    %340 = tpu.dynamic_rotate %3 by %c14_i32 dim 0 : vector<16x64xf32>, i32 -> vector<16x64xf32>
    %cst_72 = arith.constant 0.000000e+00 : f32
    %341 = vector.broadcast %cst_72 : f32 to vector<16x64xf32>
    %342 = arith.select %339, %340, %341 : vector<16x64xi1>, vector<16x64xf32>
    %343 = vector.broadcast %337 : vector<1x64xf32> to vector<16x64xf32>
    %344 = arith.mulf %342, %343 : vector<16x64xf32>
    %345 = arith.addf %335, %344 : vector<16x64xf32>
    %c1_73 = arith.constant 1 : index
    %c2_74 = arith.constant 2 : index
    %c0_75 = arith.constant 0 : index
    %346 = vector.load %arg2[%c1_73, %c2_74, %c0_75] : memref<2x120x64xf32, #tpu.memory_space<vmem>>, vector<1x1x64xf32>
    %347 = vector.shape_cast %346 : vector<1x1x64xf32> to vector<1x64xf32>
    %c7_i32 = arith.constant 7 : i32
    %348 = vector.broadcast %c7_i32 : i32 to vector<16x64xi32>
    %349 = arith.cmpi slt, %15, %348 : vector<16x64xi32>
    %c15_i32 = arith.constant 15 : i32
    %350 = tpu.dynamic_rotate %3 by %c15_i32 dim 0 : vector<16x64xf32>, i32 -> vector<16x64xf32>
    %cst_76 = arith.constant 0.000000e+00 : f32
    %351 = vector.broadcast %cst_76 : f32 to vector<16x64xf32>
    %352 = arith.select %349, %350, %351 : vector<16x64xi1>, vector<16x64xf32>
    %353 = vector.broadcast %347 : vector<1x64xf32> to vector<16x64xf32>
    %354 = arith.mulf %352, %353 : vector<16x64xf32>
    %355 = arith.addf %345, %354 : vector<16x64xf32>
    %c1_77 = arith.constant 1 : index
    %c3_78 = arith.constant 3 : index
    %c0_79 = arith.constant 0 : index
    %356 = vector.load %arg2[%c1_77, %c3_78, %c0_79] : memref<2x120x64xf32, #tpu.memory_space<vmem>>, vector<1x1x64xf32>
    %357 = vector.shape_cast %356 : vector<1x1x64xf32> to vector<1x64xf32>
    %358 = vector.broadcast %357 : vector<1x64xf32> to vector<16x64xf32>
    %359 = arith.mulf %3, %358 : vector<16x64xf32>
    %360 = arith.addf %355, %359 : vector<16x64xf32>
    %361 = vector.broadcast %314 : vector<1x64xf32> to vector<16x64xf32>
    %362 = arith.addf %360, %361 : vector<16x64xf32>
    %363 = arith.negf %362 : vector<16x64xf32>
    %364 = math.exp %363 : vector<16x64xf32>
    %cst_80 = arith.constant 1.000000e+00 : f32
    %365 = vector.broadcast %cst_80 : f32 to vector<16x64xf32>
    %366 = arith.addf %365, %364 : vector<16x64xf32>
    %367 = arith.divf %365, %366 : vector<16x64xf32>
    %368 = arith.mulf %362, %367 : vector<16x64xf32>
    %cst_81 = arith.constant dense<0.000000e+00> : vector<16x64xf32>
    %369 = tpu.matmul %368, %320, %cst_81 {dimension_numbers = #tpu.dot_dimension_numbers<[1], [0], [0], [1], [0, 0, 1, 1], [], []>} : vector<16x64xf32>, vector<64x64xf32>, vector<16x64xf32> -> vector<16x64xf32>
    %370 = vector.broadcast %316 : vector<1x64xf32> to vector<16x64xf32>
    %371 = arith.addf %369, %370 : vector<16x64xf32>
    %cst_82 = arith.constant 0.000000e+00 : f32
    %372 = vector.broadcast %cst_82 : f32 to vector<16x64xf32>
    %373 = arith.maximumf %371, %372 : vector<16x64xf32>
    %374 = vector.broadcast %cst_82 : f32 to vector<16x64xf32>
    %375 = arith.subf %371, %374 : vector<16x64xf32>
    %376 = arith.cmpf one, %375, %375 : vector<16x64xf32>
    %377 = vector.broadcast %cst_82 : f32 to vector<16x64xf32>
    %378 = arith.addf %371, %377 : vector<16x64xf32>
    %379 = math.absf %375 : vector<16x64xf32>
    %cst_83 = arith.constant 0.000000e+00 : f32
    %380 = vector.broadcast %cst_83 : f32 to vector<16x64xf32>
    %381 = arith.subf %380, %379 : vector<16x64xf32>
    %382 = math.exp %381 : vector<16x64xf32>
    %383 = math.log1p %382 : vector<16x64xf32>
    %384 = arith.addf %373, %383 : vector<16x64xf32>
    %385 = arith.select %376, %378, %384 : vector<16x64xi1>, vector<16x64xf32>
    %cst_84 = arith.constant dense<0.000000e+00> : vector<32x16xf32>
    %386 = tpu.matmul %322, %368, %cst_84 {dimension_numbers = #tpu.dot_dimension_numbers<[1], [1], [0], [0], [0, 0, 1, 0], [], []>} : vector<32x64xf32>, vector<16x64xf32>, vector<32x16xf32> -> vector<32x16xf32>
    %387 = vector.extract_strided_slice %368 {offsets = [0, 0], sizes = [8, 64], strides = [1, 1]} : vector<16x64xf32> to vector<8x64xf32>
    %388 = vector.extract_strided_slice %368 {offsets = [8, 0], sizes = [8, 64], strides = [1, 1]} : vector<16x64xf32> to vector<8x64xf32>
    %389 = tpu.concatenate %387, %388 in 1 : vector<8x64xf32>, vector<8x64xf32> -> vector<8x128xf32>
    %390 = vector.extract_strided_slice %385 {offsets = [0, 0], sizes = [8, 64], strides = [1, 1]} : vector<16x64xf32> to vector<8x64xf32>
    %391 = vector.extract_strided_slice %385 {offsets = [8, 0], sizes = [8, 64], strides = [1, 1]} : vector<16x64xf32> to vector<8x64xf32>
    %392 = tpu.concatenate %390, %391 in 1 : vector<8x64xf32>, vector<8x64xf32> -> vector<8x128xf32>
    %393 = arith.mulf %392, %389 : vector<8x128xf32>
    %394 = tpu.concatenate %324, %324 in 1 : vector<16x64xf32>, vector<16x64xf32> -> vector<16x128xf32>
    %395 = vector.extract_strided_slice %392 {offsets = [0, 0], sizes = [1, 128], strides = [1, 1]} : vector<8x128xf32> to vector<1x128xf32>
    %396 = vector.broadcast %395 : vector<1x128xf32> to vector<16x128xf32>
    %397 = arith.mulf %396, %394 : vector<16x128xf32>
    %398 = math.exp %397 : vector<16x128xf32>
    %399 = vector.extract_strided_slice %386 {offsets = [0, 0], sizes = [16, 1], strides = [1, 1]} : vector<32x16xf32> to vector<16x1xf32>
    %400 = vector.shape_cast %399 : vector<16x1xf32> to vector<16x1xf32>
    %401 = vector.broadcast %400 : vector<16x1xf32> to vector<16x64xf32>
    %402 = vector.extract_strided_slice %386 {offsets = [0, 8], sizes = [16, 1], strides = [1, 1]} : vector<32x16xf32> to vector<16x1xf32>
    %403 = vector.shape_cast %402 : vector<16x1xf32> to vector<16x1xf32>
    %404 = vector.broadcast %403 : vector<16x1xf32> to vector<16x64xf32>
    %405 = tpu.concatenate %401, %404 in 1 : vector<16x64xf32>, vector<16x64xf32> -> vector<16x128xf32>
    %406 = vector.extract_strided_slice %386 {offsets = [16, 0], sizes = [16, 1], strides = [1, 1]} : vector<32x16xf32> to vector<16x1xf32>
    %407 = vector.shape_cast %406 : vector<16x1xf32> to vector<16x1xf32>
    %408 = vector.broadcast %407 : vector<16x1xf32> to vector<16x64xf32>
    %409 = vector.extract_strided_slice %386 {offsets = [16, 8], sizes = [16, 1], strides = [1, 1]} : vector<32x16xf32> to vector<16x1xf32>
    %410 = vector.shape_cast %409 : vector<16x1xf32> to vector<16x1xf32>
    %411 = vector.broadcast %410 : vector<16x1xf32> to vector<16x64xf32>
    %412 = tpu.concatenate %408, %411 in 1 : vector<16x64xf32>, vector<16x64xf32> -> vector<16x128xf32>
    %413 = vector.extract_strided_slice %393 {offsets = [0, 0], sizes = [1, 128], strides = [1, 1]} : vector<8x128xf32> to vector<1x128xf32>
    %414 = vector.broadcast %413 : vector<1x128xf32> to vector<16x128xf32>
    %415 = arith.mulf %405, %414 : vector<16x128xf32>
    %416 = vector.extract_strided_slice %392 {offsets = [1, 0], sizes = [1, 128], strides = [1, 1]} : vector<8x128xf32> to vector<1x128xf32>
    %417 = vector.broadcast %416 : vector<1x128xf32> to vector<16x128xf32>
    %418 = arith.mulf %417, %394 : vector<16x128xf32>
    %419 = math.exp %418 : vector<16x128xf32>
    %420 = vector.extract_strided_slice %386 {offsets = [0, 1], sizes = [16, 1], strides = [1, 1]} : vector<32x16xf32> to vector<16x1xf32>
    %421 = vector.shape_cast %420 : vector<16x1xf32> to vector<16x1xf32>
    %422 = vector.broadcast %421 : vector<16x1xf32> to vector<16x64xf32>
    %423 = vector.extract_strided_slice %386 {offsets = [0, 9], sizes = [16, 1], strides = [1, 1]} : vector<32x16xf32> to vector<16x1xf32>
    %424 = vector.shape_cast %423 : vector<16x1xf32> to vector<16x1xf32>
    %425 = vector.broadcast %424 : vector<16x1xf32> to vector<16x64xf32>
    %426 = tpu.concatenate %422, %425 in 1 : vector<16x64xf32>, vector<16x64xf32> -> vector<16x128xf32>
    %427 = vector.extract_strided_slice %386 {offsets = [16, 1], sizes = [16, 1], strides = [1, 1]} : vector<32x16xf32> to vector<16x1xf32>
    %428 = vector.shape_cast %427 : vector<16x1xf32> to vector<16x1xf32>
    %429 = vector.broadcast %428 : vector<16x1xf32> to vector<16x64xf32>
    %430 = vector.extract_strided_slice %386 {offsets = [16, 9], sizes = [16, 1], strides = [1, 1]} : vector<32x16xf32> to vector<16x1xf32>
    %431 = vector.shape_cast %430 : vector<16x1xf32> to vector<16x1xf32>
    %432 = vector.broadcast %431 : vector<16x1xf32> to vector<16x64xf32>
    %433 = tpu.concatenate %429, %432 in 1 : vector<16x64xf32>, vector<16x64xf32> -> vector<16x128xf32>
    %434 = vector.extract_strided_slice %393 {offsets = [1, 0], sizes = [1, 128], strides = [1, 1]} : vector<8x128xf32> to vector<1x128xf32>
    %435 = vector.broadcast %434 : vector<1x128xf32> to vector<16x128xf32>
    %436 = arith.mulf %426, %435 : vector<16x128xf32>
    %437 = vector.extract_strided_slice %392 {offsets = [2, 0], sizes = [1, 128], strides = [1, 1]} : vector<8x128xf32> to vector<1x128xf32>
    %438 = vector.broadcast %437 : vector<1x128xf32> to vector<16x128xf32>
    %439 = arith.mulf %438, %394 : vector<16x128xf32>
    %440 = math.exp %439 : vector<16x128xf32>
    %441 = vector.extract_strided_slice %386 {offsets = [0, 2], sizes = [16, 1], strides = [1, 1]} : vector<32x16xf32> to vector<16x1xf32>
    %442 = vector.shape_cast %441 : vector<16x1xf32> to vector<16x1xf32>
    %443 = vector.broadcast %442 : vector<16x1xf32> to vector<16x64xf32>
    %444 = vector.extract_strided_slice %386 {offsets = [0, 10], sizes = [16, 1], strides = [1, 1]} : vector<32x16xf32> to vector<16x1xf32>
    %445 = vector.shape_cast %444 : vector<16x1xf32> to vector<16x1xf32>
    %446 = vector.broadcast %445 : vector<16x1xf32> to vector<16x64xf32>
    %447 = tpu.concatenate %443, %446 in 1 : vector<16x64xf32>, vector<16x64xf32> -> vector<16x128xf32>
    %448 = vector.extract_strided_slice %386 {offsets = [16, 2], sizes = [16, 1], strides = [1, 1]} : vector<32x16xf32> to vector<16x1xf32>
    %449 = vector.shape_cast %448 : vector<16x1xf32> to vector<16x1xf32>
    %450 = vector.broadcast %449 : vector<16x1xf32> to vector<16x64xf32>
    %451 = vector.extract_strided_slice %386 {offsets = [16, 10], sizes = [16, 1], strides = [1, 1]} : vector<32x16xf32> to vector<16x1xf32>
    %452 = vector.shape_cast %451 : vector<16x1xf32> to vector<16x1xf32>
    %453 = vector.broadcast %452 : vector<16x1xf32> to vector<16x64xf32>
    %454 = tpu.concatenate %450, %453 in 1 : vector<16x64xf32>, vector<16x64xf32> -> vector<16x128xf32>
    %455 = vector.extract_strided_slice %393 {offsets = [2, 0], sizes = [1, 128], strides = [1, 1]} : vector<8x128xf32> to vector<1x128xf32>
    %456 = vector.broadcast %455 : vector<1x128xf32> to vector<16x128xf32>
    %457 = arith.mulf %447, %456 : vector<16x128xf32>
    %458 = vector.extract_strided_slice %392 {offsets = [3, 0], sizes = [1, 128], strides = [1, 1]} : vector<8x128xf32> to vector<1x128xf32>
    %459 = vector.broadcast %458 : vector<1x128xf32> to vector<16x128xf32>
    %460 = arith.mulf %459, %394 : vector<16x128xf32>
    %461 = math.exp %460 : vector<16x128xf32>
    %462 = vector.extract_strided_slice %386 {offsets = [0, 3], sizes = [16, 1], strides = [1, 1]} : vector<32x16xf32> to vector<16x1xf32>
    %463 = vector.shape_cast %462 : vector<16x1xf32> to vector<16x1xf32>
    %464 = vector.broadcast %463 : vector<16x1xf32> to vector<16x64xf32>
    %465 = vector.extract_strided_slice %386 {offsets = [0, 11], sizes = [16, 1], strides = [1, 1]} : vector<32x16xf32> to vector<16x1xf32>
    %466 = vector.shape_cast %465 : vector<16x1xf32> to vector<16x1xf32>
    %467 = vector.broadcast %466 : vector<16x1xf32> to vector<16x64xf32>
    %468 = tpu.concatenate %464, %467 in 1 : vector<16x64xf32>, vector<16x64xf32> -> vector<16x128xf32>
    %469 = vector.extract_strided_slice %386 {offsets = [16, 3], sizes = [16, 1], strides = [1, 1]} : vector<32x16xf32> to vector<16x1xf32>
    %470 = vector.shape_cast %469 : vector<16x1xf32> to vector<16x1xf32>
    %471 = vector.broadcast %470 : vector<16x1xf32> to vector<16x64xf32>
    %472 = vector.extract_strided_slice %386 {offsets = [16, 11], sizes = [16, 1], strides = [1, 1]} : vector<32x16xf32> to vector<16x1xf32>
    %473 = vector.shape_cast %472 : vector<16x1xf32> to vector<16x1xf32>
    %474 = vector.broadcast %473 : vector<16x1xf32> to vector<16x64xf32>
    %475 = tpu.concatenate %471, %474 in 1 : vector<16x64xf32>, vector<16x64xf32> -> vector<16x128xf32>
    %476 = vector.extract_strided_slice %393 {offsets = [3, 0], sizes = [1, 128], strides = [1, 1]} : vector<8x128xf32> to vector<1x128xf32>
    %477 = vector.broadcast %476 : vector<1x128xf32> to vector<16x128xf32>
    %478 = arith.mulf %468, %477 : vector<16x128xf32>
    %479 = vector.extract_strided_slice %392 {offsets = [4, 0], sizes = [1, 128], strides = [1, 1]} : vector<8x128xf32> to vector<1x128xf32>
    %480 = vector.broadcast %479 : vector<1x128xf32> to vector<16x128xf32>
    %481 = arith.mulf %480, %394 : vector<16x128xf32>
    %482 = math.exp %481 : vector<16x128xf32>
    %483 = vector.extract_strided_slice %386 {offsets = [0, 4], sizes = [16, 1], strides = [1, 1]} : vector<32x16xf32> to vector<16x1xf32>
    %484 = vector.shape_cast %483 : vector<16x1xf32> to vector<16x1xf32>
    %485 = vector.broadcast %484 : vector<16x1xf32> to vector<16x64xf32>
    %486 = vector.extract_strided_slice %386 {offsets = [0, 12], sizes = [16, 1], strides = [1, 1]} : vector<32x16xf32> to vector<16x1xf32>
    %487 = vector.shape_cast %486 : vector<16x1xf32> to vector<16x1xf32>
    %488 = vector.broadcast %487 : vector<16x1xf32> to vector<16x64xf32>
    %489 = tpu.concatenate %485, %488 in 1 : vector<16x64xf32>, vector<16x64xf32> -> vector<16x128xf32>
    %490 = vector.extract_strided_slice %386 {offsets = [16, 4], sizes = [16, 1], strides = [1, 1]} : vector<32x16xf32> to vector<16x1xf32>
    %491 = vector.shape_cast %490 : vector<16x1xf32> to vector<16x1xf32>
    %492 = vector.broadcast %491 : vector<16x1xf32> to vector<16x64xf32>
    %493 = vector.extract_strided_slice %386 {offsets = [16, 12], sizes = [16, 1], strides = [1, 1]} : vector<32x16xf32> to vector<16x1xf32>
    %494 = vector.shape_cast %493 : vector<16x1xf32> to vector<16x1xf32>
    %495 = vector.broadcast %494 : vector<16x1xf32> to vector<16x64xf32>
    %496 = tpu.concatenate %492, %495 in 1 : vector<16x64xf32>, vector<16x64xf32> -> vector<16x128xf32>
    %497 = vector.extract_strided_slice %393 {offsets = [4, 0], sizes = [1, 128], strides = [1, 1]} : vector<8x128xf32> to vector<1x128xf32>
    %498 = vector.broadcast %497 : vector<1x128xf32> to vector<16x128xf32>
    %499 = arith.mulf %489, %498 : vector<16x128xf32>
    %500 = vector.extract_strided_slice %392 {offsets = [5, 0], sizes = [1, 128], strides = [1, 1]} : vector<8x128xf32> to vector<1x128xf32>
    %501 = vector.broadcast %500 : vector<1x128xf32> to vector<16x128xf32>
    %502 = arith.mulf %501, %394 : vector<16x128xf32>
    %503 = math.exp %502 : vector<16x128xf32>
    %504 = vector.extract_strided_slice %386 {offsets = [0, 5], sizes = [16, 1], strides = [1, 1]} : vector<32x16xf32> to vector<16x1xf32>
    %505 = vector.shape_cast %504 : vector<16x1xf32> to vector<16x1xf32>
    %506 = vector.broadcast %505 : vector<16x1xf32> to vector<16x64xf32>
    %507 = vector.extract_strided_slice %386 {offsets = [0, 13], sizes = [16, 1], strides = [1, 1]} : vector<32x16xf32> to vector<16x1xf32>
    %508 = vector.shape_cast %507 : vector<16x1xf32> to vector<16x1xf32>
    %509 = vector.broadcast %508 : vector<16x1xf32> to vector<16x64xf32>
    %510 = tpu.concatenate %506, %509 in 1 : vector<16x64xf32>, vector<16x64xf32> -> vector<16x128xf32>
    %511 = vector.extract_strided_slice %386 {offsets = [16, 5], sizes = [16, 1], strides = [1, 1]} : vector<32x16xf32> to vector<16x1xf32>
    %512 = vector.shape_cast %511 : vector<16x1xf32> to vector<16x1xf32>
    %513 = vector.broadcast %512 : vector<16x1xf32> to vector<16x64xf32>
    %514 = vector.extract_strided_slice %386 {offsets = [16, 13], sizes = [16, 1], strides = [1, 1]} : vector<32x16xf32> to vector<16x1xf32>
    %515 = vector.shape_cast %514 : vector<16x1xf32> to vector<16x1xf32>
    %516 = vector.broadcast %515 : vector<16x1xf32> to vector<16x64xf32>
    %517 = tpu.concatenate %513, %516 in 1 : vector<16x64xf32>, vector<16x64xf32> -> vector<16x128xf32>
    %518 = vector.extract_strided_slice %393 {offsets = [5, 0], sizes = [1, 128], strides = [1, 1]} : vector<8x128xf32> to vector<1x128xf32>
    %519 = vector.broadcast %518 : vector<1x128xf32> to vector<16x128xf32>
    %520 = arith.mulf %510, %519 : vector<16x128xf32>
    %521 = vector.extract_strided_slice %392 {offsets = [6, 0], sizes = [1, 128], strides = [1, 1]} : vector<8x128xf32> to vector<1x128xf32>
    %522 = vector.broadcast %521 : vector<1x128xf32> to vector<16x128xf32>
    %523 = arith.mulf %522, %394 : vector<16x128xf32>
    %524 = math.exp %523 : vector<16x128xf32>
    %525 = vector.extract_strided_slice %386 {offsets = [0, 6], sizes = [16, 1], strides = [1, 1]} : vector<32x16xf32> to vector<16x1xf32>
    %526 = vector.shape_cast %525 : vector<16x1xf32> to vector<16x1xf32>
    %527 = vector.broadcast %526 : vector<16x1xf32> to vector<16x64xf32>
    %528 = vector.extract_strided_slice %386 {offsets = [0, 14], sizes = [16, 1], strides = [1, 1]} : vector<32x16xf32> to vector<16x1xf32>
    %529 = vector.shape_cast %528 : vector<16x1xf32> to vector<16x1xf32>
    %530 = vector.broadcast %529 : vector<16x1xf32> to vector<16x64xf32>
    %531 = tpu.concatenate %527, %530 in 1 : vector<16x64xf32>, vector<16x64xf32> -> vector<16x128xf32>
    %532 = vector.extract_strided_slice %386 {offsets = [16, 6], sizes = [16, 1], strides = [1, 1]} : vector<32x16xf32> to vector<16x1xf32>
    %533 = vector.shape_cast %532 : vector<16x1xf32> to vector<16x1xf32>
    %534 = vector.broadcast %533 : vector<16x1xf32> to vector<16x64xf32>
    %535 = vector.extract_strided_slice %386 {offsets = [16, 14], sizes = [16, 1], strides = [1, 1]} : vector<32x16xf32> to vector<16x1xf32>
    %536 = vector.shape_cast %535 : vector<16x1xf32> to vector<16x1xf32>
    %537 = vector.broadcast %536 : vector<16x1xf32> to vector<16x64xf32>
    %538 = tpu.concatenate %534, %537 in 1 : vector<16x64xf32>, vector<16x64xf32> -> vector<16x128xf32>
    %539 = vector.extract_strided_slice %393 {offsets = [6, 0], sizes = [1, 128], strides = [1, 1]} : vector<8x128xf32> to vector<1x128xf32>
    %540 = vector.broadcast %539 : vector<1x128xf32> to vector<16x128xf32>
    %541 = arith.mulf %531, %540 : vector<16x128xf32>
    %542 = vector.extract_strided_slice %392 {offsets = [7, 0], sizes = [1, 128], strides = [1, 1]} : vector<8x128xf32> to vector<1x128xf32>
    %543 = vector.broadcast %542 : vector<1x128xf32> to vector<16x128xf32>
    %544 = arith.mulf %543, %394 : vector<16x128xf32>
    %545 = math.exp %544 : vector<16x128xf32>
    %546 = vector.extract_strided_slice %386 {offsets = [0, 7], sizes = [16, 1], strides = [1, 1]} : vector<32x16xf32> to vector<16x1xf32>
    %547 = vector.shape_cast %546 : vector<16x1xf32> to vector<16x1xf32>
    %548 = vector.broadcast %547 : vector<16x1xf32> to vector<16x64xf32>
    %549 = vector.extract_strided_slice %386 {offsets = [0, 15], sizes = [16, 1], strides = [1, 1]} : vector<32x16xf32> to vector<16x1xf32>
    %550 = vector.shape_cast %549 : vector<16x1xf32> to vector<16x1xf32>
    %551 = vector.broadcast %550 : vector<16x1xf32> to vector<16x64xf32>
    %552 = tpu.concatenate %548, %551 in 1 : vector<16x64xf32>, vector<16x64xf32> -> vector<16x128xf32>
    %553 = vector.extract_strided_slice %386 {offsets = [16, 7], sizes = [16, 1], strides = [1, 1]} : vector<32x16xf32> to vector<16x1xf32>
    %554 = vector.shape_cast %553 : vector<16x1xf32> to vector<16x1xf32>
    %555 = vector.broadcast %554 : vector<16x1xf32> to vector<16x64xf32>
    %556 = vector.extract_strided_slice %386 {offsets = [16, 15], sizes = [16, 1], strides = [1, 1]} : vector<32x16xf32> to vector<16x1xf32>
    %557 = vector.shape_cast %556 : vector<16x1xf32> to vector<16x1xf32>
    %558 = vector.broadcast %557 : vector<16x1xf32> to vector<16x64xf32>
    %559 = tpu.concatenate %555, %558 in 1 : vector<16x64xf32>, vector<16x64xf32> -> vector<16x128xf32>
    %560 = vector.extract_strided_slice %393 {offsets = [7, 0], sizes = [1, 128], strides = [1, 1]} : vector<8x128xf32> to vector<1x128xf32>
    %561 = vector.broadcast %560 : vector<1x128xf32> to vector<16x128xf32>
    %562 = arith.mulf %552, %561 : vector<16x128xf32>
    %cst_85 = arith.constant 0.000000e+00 : f32
    %563 = vector.broadcast %cst_85 : f32 to vector<16x128xf32>
    %564 = arith.mulf %545, %563 : vector<16x128xf32>
    %565 = arith.addf %564, %562 : vector<16x128xf32>
    %566 = arith.mulf %559, %565 : vector<16x128xf32>
    %cst_86 = arith.constant dense<0.000000e+00> : vector<128xf32>
    %567 = vector.multi_reduction <add>, %566, %cst_86 [0] : vector<16x128xf32> to vector<128xf32>
    %568 = vector.shape_cast %567 : vector<128xf32> to vector<1x128xf32>
    %569 = arith.mulf %524, %565 : vector<16x128xf32>
    %570 = arith.addf %569, %541 : vector<16x128xf32>
    %571 = arith.mulf %538, %570 : vector<16x128xf32>
    %cst_87 = arith.constant dense<0.000000e+00> : vector<128xf32>
    %572 = vector.multi_reduction <add>, %571, %cst_87 [0] : vector<16x128xf32> to vector<128xf32>
    %573 = vector.shape_cast %572 : vector<128xf32> to vector<1x128xf32>
    %574 = arith.mulf %503, %570 : vector<16x128xf32>
    %575 = arith.addf %574, %520 : vector<16x128xf32>
    %576 = arith.mulf %517, %575 : vector<16x128xf32>
    %cst_88 = arith.constant dense<0.000000e+00> : vector<128xf32>
    %577 = vector.multi_reduction <add>, %576, %cst_88 [0] : vector<16x128xf32> to vector<128xf32>
    %578 = vector.shape_cast %577 : vector<128xf32> to vector<1x128xf32>
    %579 = arith.mulf %482, %575 : vector<16x128xf32>
    %580 = arith.addf %579, %499 : vector<16x128xf32>
    %581 = arith.mulf %496, %580 : vector<16x128xf32>
    %cst_89 = arith.constant dense<0.000000e+00> : vector<128xf32>
    %582 = vector.multi_reduction <add>, %581, %cst_89 [0] : vector<16x128xf32> to vector<128xf32>
    %583 = vector.shape_cast %582 : vector<128xf32> to vector<1x128xf32>
    %584 = arith.mulf %461, %580 : vector<16x128xf32>
    %585 = arith.addf %584, %478 : vector<16x128xf32>
    %586 = arith.mulf %475, %585 : vector<16x128xf32>
    %cst_90 = arith.constant dense<0.000000e+00> : vector<128xf32>
    %587 = vector.multi_reduction <add>, %586, %cst_90 [0] : vector<16x128xf32> to vector<128xf32>
    %588 = vector.shape_cast %587 : vector<128xf32> to vector<1x128xf32>
    %589 = arith.mulf %440, %585 : vector<16x128xf32>
    %590 = arith.addf %589, %457 : vector<16x128xf32>
    %591 = arith.mulf %454, %590 : vector<16x128xf32>
    %cst_91 = arith.constant dense<0.000000e+00> : vector<128xf32>
    %592 = vector.multi_reduction <add>, %591, %cst_91 [0] : vector<16x128xf32> to vector<128xf32>
    %593 = vector.shape_cast %592 : vector<128xf32> to vector<1x128xf32>
    %594 = arith.mulf %419, %590 : vector<16x128xf32>
    %595 = arith.addf %594, %436 : vector<16x128xf32>
    %596 = arith.mulf %433, %595 : vector<16x128xf32>
    %cst_92 = arith.constant dense<0.000000e+00> : vector<128xf32>
    %597 = vector.multi_reduction <add>, %596, %cst_92 [0] : vector<16x128xf32> to vector<128xf32>
    %598 = vector.shape_cast %597 : vector<128xf32> to vector<1x128xf32>
    %599 = arith.mulf %398, %595 : vector<16x128xf32>
    %600 = arith.addf %599, %415 : vector<16x128xf32>
    %601 = arith.mulf %412, %600 : vector<16x128xf32>
    %cst_93 = arith.constant dense<0.000000e+00> : vector<128xf32>
    %602 = vector.multi_reduction <add>, %601, %cst_93 [0] : vector<16x128xf32> to vector<128xf32>
    %603 = vector.shape_cast %602 : vector<128xf32> to vector<1x128xf32>
    %604 = tpu.concatenate %603, %598, %593, %588, %583, %578, %573, %568 in 0 : vector<1x128xf32>, vector<1x128xf32>, vector<1x128xf32>, vector<1x128xf32>, vector<1x128xf32>, vector<1x128xf32>, vector<1x128xf32>, vector<1x128xf32> -> vector<8x128xf32>
    %605 = tpu.concatenate %318, %318 in 1 : vector<1x64xf32>, vector<1x64xf32> -> vector<1x128xf32>
    %606 = vector.broadcast %605 : vector<1x128xf32> to vector<8x128xf32>
    %607 = arith.mulf %606, %389 : vector<8x128xf32>
    %608 = arith.addf %604, %607 : vector<8x128xf32>
    %609 = arith.mulf %608, %13 : vector<8x128xf32>
    %c0_94 = arith.constant 0 : index
    %c0_95 = arith.constant 0 : index
    %610 = vector.load %arg3[%c0_94, %c0_95] : memref<64x32xf32, #tpu.memory_space<vmem>>, vector<64x32xf32>
    %611 = arith.addf %312, %609 : vector<8x128xf32>
    %612 = vector.extract_strided_slice %611 {offsets = [0, 0], sizes = [8, 64], strides = [1, 1]} : vector<8x128xf32> to vector<8x64xf32>
    %613 = vector.extract_strided_slice %611 {offsets = [0, 64], sizes = [8, 64], strides = [1, 1]} : vector<8x128xf32> to vector<8x64xf32>
    %614 = tpu.concatenate %612, %613 in 0 : vector<8x64xf32>, vector<8x64xf32> -> vector<16x64xf32>
    %cst_96 = arith.constant dense<0.000000e+00> : vector<16x32xf32>
    %615 = tpu.matmul %614, %610, %cst_96 {dimension_numbers = #tpu.dot_dimension_numbers<[1], [0], [0], [1], [0, 0, 1, 1], [], []>} : vector<16x64xf32>, vector<64x32xf32>, vector<16x32xf32> -> vector<16x32xf32>
    %c0_97 = arith.constant 0 : index
    %c0_98 = arith.constant 0 : index
    %616 = vector.load %arg4[%c0_97, %c0_98] : memref<16x32xf32, #tpu.memory_space<vmem>>, vector<16x32xf32>
    tpu.vector_store %arg4[%c0_97, %c0_98], %615 {strides = array<i32>} : memref<16x32xf32, #tpu.memory_space<vmem>>, vector<16x32xf32>,
    return
  }
}

</mosaic_0001>

<llo_original>
// kernel: tpu_custom_call.1
$region0: #{tpu_custom_call.1}
  #allocation0 [shape = 'u32[]', space=smem, size = 0x4, offset = 0x4, fixed_abs, tag = 'smem constant byte address 0x4 - core index']
  #allocation1 [shape = 'u32[72,128]{1,0:T(1,128)}', space=vmem, size = 0x9000, scoped, tag = 'internal scratch']
  %s0 = inlined_call_operand.vmem [shape: f32[16,32], index: 0, kind: input, shape index: {}]
  %s1 = inlined_call_operand.vmem [shape: f32[32,128], index: 1, kind: input, shape index: {}]
  %s2 = inlined_call_operand.vmem [shape: f32[2,120,64], index: 2, kind: input, shape index: {}]
  %s3 = inlined_call_operand.vmem [shape: f32[64,32], index: 3, kind: input, shape index: {}]
  %s4 = inlined_call_operand.hbm [shape: f32[16,32], index: 4, kind: output, shape index: {}]
  %s5 = sld [smem:[#allocation0]]
  $region26: #{tpu_custom_call.1} parent=0
    _
  %s7 = ssub.s32 1, %s5
  %s8 = scalar_select 0, %s7, %s5
  $region1: #{tpu_custom_call.1} parent=0
    #allocation2 [shape = 'u8[8192]{0}', space=vmem, size = 0x2000, scoped, tag = 'output window, operand 0, single buffered']
    #allocation3 [shape = 's32[1]{0}', space=sflag, size = 0x4, scoped, tag = 'scoped memory for tpu_custom_call.1']
    %9 = vsyncpa [#allocation3], 0
    // Predicated region
    $region2: #{tpu_custom_call.1} parent=1 // pred_check
      _
    $region3: #{tpu_custom_call.1} parent=1 // pred_check_branch
      %11 = sbr.rel (0) target = $region5
    $region4: #{tpu_custom_call.1} parent=1 // pred_region
      _
    $region5: #{tpu_custom_call.1} parent=1 // pred_fallthru
      _
    // Predicated region
    $region6: #{tpu_custom_call.1} parent=1 // pred_check
      _
    $region7: #{tpu_custom_call.1} parent=1 // pred_check_branch
      %13 = sbr.rel (0) target = $region9
    $region8: #{tpu_custom_call.1} parent=1 // pred_region
      _
    $region9: #{tpu_custom_call.1} parent=1 // pred_fallthru
      _
    // Predicated region
    $region10: #{tpu_custom_call.1} parent=1 // pred_check
      _
    $region11: #{tpu_custom_call.1} parent=1 // pred_check_branch
      %15 = sbr.rel (0) target = $region13
    $region12: #{tpu_custom_call.1} parent=1 // pred_region
      _
    $region13: #{tpu_custom_call.1} parent=1 // pred_fallthru
      _
    // Predicated region
    $region14: #{tpu_custom_call.1} parent=1 // pred_check
      _
    $region15: #{tpu_custom_call.1} parent=1 // pred_check_branch
      %17 = sbr.rel (0) target = $region17
    $region16: #{tpu_custom_call.1} parent=1 // pred_region
      _
    $region17: #{tpu_custom_call.1} parent=1 // pred_fallthru
      _
    %v18 = vld [vmem:[%s0] sm:$0xff]
    %v19 = vld [vmem:[%s0 + $0x8] sm:$0xff]
    %v20 = vld [vmem:[%s1] sm:$0xff]
    %v21 = vld [vmem:[%s1 + $0x8] sm:$0xff]
    %v22 = vld [vmem:[%s1 + $0x10] sm:$0xff]
    %v23 = vld [vmem:[%s1 + $0x18] sm:$0xff]
    %vm24 = vcmask 261120
    %v26 = vsel %vm24, %v18, 0
    %v29 = vsel %vm24, %v19, 0
    %31 = vmatpush.msra.mxu0 0.0
    %32 = vmatpush.msra.mxu0 0.0
    %33 = vmatpush.msra.mxu0 0.0
    %34 = vmatpush.msra.mxu0 0.0
    %35 = vmatpush.msra.mxu0 0.0
    %36 = vmatpush.msra.mxu0 0.0
    %37 = vmatpush.msra.mxu0 0.0
    %38 = vmatpush.msra.mxu0 0.0
    %39 = vmatpush.msra.mxu0 0.0
    %40 = vmatpush.msra.mxu0 0.0
    %41 = vmatpush.msra.mxu0 0.0
    %42 = vmatpush.msra.mxu0 0.0
    %43 = vmatpush.msra.mxu0 %v23
    %44 = vmatpush.msra.mxu0 %v22
    %45 = vmatpush.msra.mxu0 %v21
    %46 = vmatpush.msra.mxu0 %v20
    %47 = vmatmul.f32.gmra.mxu0 %v26
    %v48 = vpop.f32.mrf.mxu0
    %v49 = vadd.f32 0.0, %v48
    %50 = vmatmul.f32.gmra.mxu0 %v29
    %v51 = vpop.f32.mrf.mxu0
    %v52 = vadd.f32 0.0, %v51
    %53 = vdwg.mxu0
    %55 = vrot.lane.b32.xlu0 %v49, 64
    %v56 = vpop.permute.xlu0 %55
    %vm58 = vcmask 523264
    %v59 = vsel %vm58, %v56, %v52
    %v60 = vxor.u32 %v59, 2147483648
    %v61 = vmul.f32 %v60, 1.442695
    %v62 = vpow.pop %v61
    %v63 = vadd.f32 %v62, 1.0
    %v64 = vrcp.pop %v63
    %v65 = vmul.f32 %v63, %v64
    %v66 = vsub.f32 1.0, %v65
    %v67 = vmul.f32 %v64, %v66
    %v68 = vadd.f32 %v64, %v67
    %vm69 = vweird.f32 %v63
    %vm70 = vweird.f32 %v64
    %vm71 = vmor %vm69, %vm70
    %v72 = vsel %vm71, %v64, %v68
    %v73 = vand.u32 2147483647, %v63
    %vm74 = vcmp.eq.f32.partialorder %v73, 8.507059e+37
    %v75 = vand.u32 %v63, 2147483648
    %v76 = vor.u32 1.1754944e-38, %v75
    %v77 = vsel %vm74, %v76, %v72
    %v78 = vmul.f32 1.0, %v77
    %v79 = vmul.f32 %v59, %v78
    %v80 = vlaneseq
    %v81 = vshrl.u32 %v80, 7
    %v82 = vld [vmem:[%s2 + $0x4] sm:$0x1]
    %v83 = vld [vmem:[%s2 + $0x5] sm:$0x1]
    %v84 = vld [vmem:[%s2 + $0x6] sm:$0x1]
    %v85 = vld [vmem:[%s2 + $0x8] sm:$0xff]
    %v86 = vld [vmem:[%s2 + $0x10] sm:$0xff]
    %v87 = vld [vmem:[%s2 + $0x18] sm:$0xff]
    %v88 = vld [vmem:[%s2 + $0x20] sm:$0xff]
    %v89 = vld [vmem:[%s2 + $0x28] sm:$0xff]
    %v90 = vld [vmem:[%s2 + $0x30] sm:$0xff]
    %v91 = vld [vmem:[%s2 + $0x38] sm:$0xff]
    %v92 = vld [vmem:[%s2 + $0x40] sm:$0xff]
    %v93 = vld [vmem:[%s2 + $0x48] sm:$0xff]
    %v94 = vld [vmem:[%s2 + $0x50] sm:$0xff]
    %v95 = vld [vmem:[%s2 + $0x58] sm:$0xff]
    %v96 = vld [vmem:[%s2 + $0x60] sm:$0xff]
    %v97 = vld [vmem:[%s2 + $0x68] sm:$0xff]
    %v98 = vld [vmem:[%s2 + $0x70] sm:$0xff]
    %v99 = vld [vmem:[%s2] sm:$0x1]
    %vm100 = vcmp.ge.s32.totalorder %v81, 3
    %v101 = vrot.slane %v49, 5
    %v102 = vrot.slane %v52, 5
    %vm103 = vcmp.lt.s32.totalorder %v81, 3
    %v104 = vsel %vm103, %v101, %v102
    %v105 = vsel %vm103, %v102, %v101
    %v106 = vsel %vm100, %v105, 0.0
    %v107 = vsel %vm100, %v104, 0.0
    %v108 = vperm.slane %v99, 0
    %v109 = vmul.f32 %v106, %v108
    %v110 = vmul.f32 %v107, %v108
    %v111 = vadd.f32 %v109, 0.0
    %v112 = vadd.f32 %v110, 0.0
    %v113 = vld [vmem:[%s2 + $0x1] sm:$0x1]
    %vm114 = vcmp.ge.s32.totalorder %v81, 2
    %v115 = vrot.slane %v49, 6
    %v116 = vrot.slane %v52, 6
    %vm117 = vcmp.lt.s32.totalorder %v81, 2
    %v118 = vsel %vm117, %v115, %v116
    %v119 = vsel %vm117, %v116, %v115
    %v120 = vsel %vm114, %v119, 0.0
    %v121 = vsel %vm114, %v118, 0.0
    %v122 = vperm.slane %v113, 0
    %v123 = vmul.f32 %v120, %v122
    %v124 = vmul.f32 %v121, %v122
    %v125 = vadd.f32 %v111, %v123
    %v126 = vadd.f32 %v112, %v124
    %v127 = vld [vmem:[%s2 + $0x2] sm:$0x1]
    %vm128 = vcmp.ge.s32.totalorder %v81, 1
    %v129 = vrot.slane %v49, 7
    %v130 = vrot.slane %v52, 7
    %vm131 = vcmp.lt.s32.totalorder %v81, 1
    %v132 = vsel %vm131, %v129, %v130
    %v133 = vsel %vm131, %v130, %v129
    %v134 = vsel %vm128, %v133, 0.0
    %v135 = vsel %vm128, %v132, 0.0
    %v136 = vperm.slane %v127, 0
    %v137 = vmul.f32 %v134, %v136
    %v138 = vmul.f32 %v135, %v136
    %v139 = vadd.f32 %v125, %v137
    %v140 = vadd.f32 %v126, %v138
    %v141 = vld [vmem:[%s2 + $0x3] sm:$0x1]
    %v142 = vperm.slane %v141, 0
    %v143 = vmul.f32 %v49, %v142
    %v144 = vmul.f32 %v52, %v142
    %v145 = vadd.f32 %v139, %v143
    %v146 = vadd.f32 %v140, %v144
    %v147 = vperm.slane %v82, 0
    %v148 = vadd.f32 %v145, %v147
    %v149 = vadd.f32 %v146, %v147
    %v150 = vxor.u32 %v148, 2147483648
    %v151 = vxor.u32 %v149, 2147483648
    %v152 = vmul.f32 %v150, 1.442695
    %v153 = vpow.pop %v152
    %v154 = vmul.f32 %v151, 1.442695
    %v155 = vpow.pop %v154
    %v156 = vadd.f32 %v153, 1.0
    %v157 = vadd.f32 %v155, 1.0
    %v158 = vrcp.pop %v156
    %v159 = vmul.f32 %v156, %v158
    %v160 = vsub.f32 1.0, %v159
    %v161 = vmul.f32 %v158, %v160
    %v162 = vadd.f32 %v158, %v161
    %vm163 = vweird.f32 %v156
    %vm164 = vweird.f32 %v158
    %vm165 = vmor %vm163, %vm164
    %v166 = vsel %vm165, %v158, %v162
    %v167 = vand.u32 2147483647, %v156
    %vm168 = vcmp.eq.f32.partialorder %v167, 8.507059e+37
    %v169 = vand.u32 %v156, 2147483648
    %v170 = vor.u32 1.1754944e-38, %v169
    %v171 = vsel %vm168, %v170, %v166
    %v172 = vmul.f32 1.0, %v171
    %v173 = vrcp.pop %v157
    %v174 = vmul.f32 %v157, %v173
    %v175 = vsub.f32 1.0, %v174
    %v176 = vmul.f32 %v173, %v175
    %v177 = vadd.f32 %v173, %v176
    %vm178 = vweird.f32 %v157
    %vm179 = vweird.f32 %v173
    %vm180 = vmor %vm178, %vm179
    %v181 = vsel %vm180, %v173, %v177
    %v182 = vand.u32 2147483647, %v157
    %vm183 = vcmp.eq.f32.partialorder %v182, 8.507059e+37
    %v184 = vand.u32 %v157, 2147483648
    %v185 = vor.u32 1.1754944e-38, %v184
    %v186 = vsel %vm183, %v185, %v181
    %v187 = vmul.f32 1.0, %v186
    %v188 = vmul.f32 %v148, %v172
    %v189 = vmul.f32 %v149, %v187
    %v190 = vperm.slane %v83, 0
    %v192 = vsel %vm58, %v188, 0
    %v195 = vsel %vm58, %v189, 0
    %197 = vmatpush.msra.mxu0 0.0
    %198 = vmatpush.msra.mxu0 0.0
    %199 = vmatpush.msra.mxu0 0.0
    %200 = vmatpush.msra.mxu0 0.0
    %201 = vmatpush.msra.mxu0 0.0
    %202 = vmatpush.msra.mxu0 0.0
    %203 = vmatpush.msra.mxu0 0.0
    %204 = vmatpush.msra.mxu0 0.0
    %205 = vmatpush.msra.mxu0 %v92
    %206 = vmatpush.msra.mxu0 %v91
    %207 = vmatpush.msra.mxu0 %v90
    %208 = vmatpush.msra.mxu0 %v89
    %209 = vmatpush.msra.mxu0 %v88
    %210 = vmatpush.msra.mxu0 %v87
    %211 = vmatpush.msra.mxu0 %v86
    %212 = vmatpush.msra.mxu0 %v85
    %213 = vmatmul.f32.gmra.mxu0 %v192
    %v214 = vpop.f32.mrf.mxu0
    %v215 = vadd.f32 %v190, %v214
    %216 = vmatmul.f32.gmra.mxu0 %v195
    %v217 = vpop.f32.mrf.mxu0
    %v218 = vadd.f32 %v190, %v217
    %219 = vdwg.mxu0
    %v220 = vmax.f32 %v215, 0.0
    %v221 = vmax.f32 %v218, 0.0
    %vm222 = vcmp.ne.f32.partialorder %v215, %v215
    %vm223 = vcmp.ne.f32.partialorder %v218, %v218
    %v224 = vadd.f32 %v215, 0.0
    %v225 = vadd.f32 %v218, 0.0
    %v226 = vand.u32 2147483647, %v215
    %v227 = vand.u32 2147483647, %v218
    %v228 = vsub.f32 0.0, %v226
    %v229 = vsub.f32 0.0, %v227
    %v230 = vmul.f32 %v228, 1.442695
    %v231 = vpow.pop %v230
    %v232 = vmul.f32 %v229, 1.442695
    %v233 = vpow.pop %v232
    %v234 = vadd.f32 %v231, 1.0
    %v235 = vlog2.pop %v234
    %v236 = vmul.f32 %v235, 0.6931472
    %v237 = vmul.f32 -0.5, %v231
    %v238 = vadd.f32 %v237, 1.0
    %v239 = vmul.f32 %v238, %v231
    %v240 = vand.u32 2147483647, %v231
    %vm241 = vcmp.lt.f32.partialorder %v240, 0.0004427343
    %v242 = vsel %vm241, %v239, %v236
    %v243 = vadd.f32 %v233, 1.0
    %v244 = vlog2.pop %v243
    %v245 = vmul.f32 %v244, 0.6931472
    %v246 = vmul.f32 -0.5, %v233
    %v247 = vadd.f32 %v246, 1.0
    %v248 = vmul.f32 %v247, %v233
    %v249 = vand.u32 2147483647, %v233
    %vm250 = vcmp.lt.f32.partialorder %v249, 0.0004427343
    %v251 = vsel %vm250, %v248, %v245
    %v252 = vadd.f32 %v220, %v242
    %v253 = vadd.f32 %v221, %v251
    %v254 = vsel %vm222, %v224, %v252
    %v255 = vsel %vm223, %v225, %v253
    %v257 = vsel %vm58, %v93, 0
    %v260 = vsel %vm58, %v94, 0
    %v263 = vsel %vm58, %v95, 0
    %v266 = vsel %vm58, %v96, 0
    %268 = vmatpush.xpose.msra.mxu0 0.0
    %269 = vmatpush.xpose.msra.mxu0 0.0
    %270 = vmatpush.xpose.msra.mxu0 0.0
    %271 = vmatpush.xpose.msra.mxu0 0.0
    %272 = vmatpush.xpose.msra.mxu0 0.0
    %273 = vmatpush.xpose.msra.mxu0 0.0
    %274 = vmatpush.xpose.msra.mxu0 0.0
    %275 = vmatpush.xpose.msra.mxu0 0.0
    %276 = vmatpush.xpose.msra.mxu0 0.0
    %277 = vmatpush.xpose.msra.mxu0 0.0
    %278 = vmatpush.xpose.msra.mxu0 0.0
    %279 = vmatpush.xpose.msra.mxu0 0.0
    %280 = vmatpush.xpose.msra.mxu0 0.0
    %281 = vmatpush.xpose.msra.mxu0 0.0
    %282 = vmatpush.xpose.msra.mxu0 %v195
    %283 = vmatpush.xpose.msra.mxu0 %v192
    %284 = vmatmul.f32.gmra.mxu0 %v257
    %v285 = vpop.f32.mrf.mxu0
    %v286 = vadd.f32 0.0, %v285
    %287 = vmatmul.f32.gmra.mxu0 %v260
    %v288 = vpop.f32.mrf.mxu0
    %v289 = vadd.f32 0.0, %v288
    %290 = vmatmul.f32.gmra.mxu0 %v263
    %v291 = vpop.f32.mrf.mxu0
    %v292 = vadd.f32 0.0, %v291
    %293 = vmatmul.f32.gmra.mxu0 %v266
    %v294 = vpop.f32.mrf.mxu0
    %v295 = vadd.f32 0.0, %v294
    %296 = vdwg.mxu0
    %297 = vrot.lane.b32.xlu0 %v189, 64
    %v298 = vpop.permute.xlu0 %297
    %v300 = vsel %vm58, %v188, %v298
    %302 = vrot.lane.b32.xlu0 %v255, 64
    %v303 = vpop.permute.xlu0 %302
    %v305 = vsel %vm58, %v254, %v303
    %v306 = vmul.f32 %v305, %v300
    %309 = vrot.lane.b32.xlu0 %v97, 64
    %v310 = vpop.permute.xlu0 %309
    %311 = vrot.lane.b32.xlu0 %v98, 64
    %v312 = vpop.permute.xlu0 %311
    %v315 = vsel %vm58, %v97, %v310
    %v316 = vsel %vm58, %v98, %v312
    %v317 = vperm.slane %v305, 0
    %v318 = vmul.f32 %v317, %v315
    %v319 = vmul.f32 %v317, %v316
    %v320 = vmul.f32 %v318, 1.442695
    %v321 = vpow.pop %v320
    %v322 = vmul.f32 %v319, 1.442695
    %v323 = vpow.pop %v322
    %325 = vset.pattern.permute.xlu0 0
    %326 = vperm.xlu0 %325, %v286
    %v327 = vpop.permute.xlu0 %326
    %330 = vset.pattern.permute.xlu0 0
    %331 = vperm.xlu0 %330, %v289
    %v332 = vpop.permute.xlu0 %331
    %334 = vset.pattern.permute.xlu0 8
    %335 = vperm.xlu0 %334, %v286
    %v336 = vpop.permute.xlu0 %335
    %338 = vset.pattern.permute.xlu0 8
    %339 = vperm.xlu0 %338, %v289
    %v340 = vpop.permute.xlu0 %339
    %v342 = vsel %vm58, %v327, %v336
    %v343 = vsel %vm58, %v332, %v340
    %345 = vset.pattern.permute.xlu0 0
    %346 = vperm.xlu0 %345, %v292
    %v347 = vpop.permute.xlu0 %346
    %350 = vset.pattern.permute.xlu0 0
    %351 = vperm.xlu0 %350, %v295
    %v352 = vpop.permute.xlu0 %351
    %354 = vset.pattern.permute.xlu0 8
    %355 = vperm.xlu0 %354, %v292
    %v356 = vpop.permute.xlu0 %355
    %358 = vset.pattern.permute.xlu0 8
    %359 = vperm.xlu0 %358, %v295
    %v360 = vpop.permute.xlu0 %359
    %v362 = vsel %vm58, %v347, %v356
    %v363 = vsel %vm58, %v352, %v360
    %v364 = vperm.slane %v306, 0
    %v365 = vmul.f32 %v342, %v364
    %v366 = vmul.f32 %v343, %v364
    %v367 = vperm.slane %v305, 1
    %v368 = vmul.f32 %v367, %v315
    %v369 = vmul.f32 %v367, %v316
    %v370 = vmul.f32 %v368, 1.442695
    %v371 = vpow.pop %v370
    %v372 = vmul.f32 %v369, 1.442695
    %v373 = vpow.pop %v372
    %374 = vset.pattern.permute.xlu0 1
    %375 = vperm.xlu0 %374, %v286
    %v376 = vpop.permute.xlu0 %375
    %378 = vset.pattern.permute.xlu0 1
    %379 = vperm.xlu0 %378, %v289
    %v380 = vpop.permute.xlu0 %379
    %382 = vset.pattern.permute.xlu0 9
    %383 = vperm.xlu0 %382, %v286
    %v384 = vpop.permute.xlu0 %383
    %386 = vset.pattern.permute.xlu0 9
    %387 = vperm.xlu0 %386, %v289
    %v388 = vpop.permute.xlu0 %387
    %v390 = vsel %vm58, %v376, %v384
    %v391 = vsel %vm58, %v380, %v388
    %392 = vset.pattern.permute.xlu0 1
    %393 = vperm.xlu0 %392, %v292
    %v394 = vpop.permute.xlu0 %393
    %396 = vset.pattern.permute.xlu0 1
    %397 = vperm.xlu0 %396, %v295
    %v398 = vpop.permute.xlu0 %397
    %400 = vset.pattern.permute.xlu0 9
    %401 = vperm.xlu0 %400, %v292
    %v402 = vpop.permute.xlu0 %401
    %404 = vset.pattern.permute.xlu0 9
    %405 = vperm.xlu0 %404, %v295
    %v406 = vpop.permute.xlu0 %405
    %v408 = vsel %vm58, %v394, %v402
    %v409 = vsel %vm58, %v398, %v406
    %v410 = vperm.slane %v306, 1
    %v411 = vmul.f32 %v390, %v410
    %v412 = vmul.f32 %v391, %v410
    %v413 = vperm.slane %v305, 2
    %v414 = vmul.f32 %v413, %v315
    %v415 = vmul.f32 %v413, %v316
    %v416 = vmul.f32 %v414, 1.442695
    %v417 = vpow.pop %v416
    %v418 = vmul.f32 %v415, 1.442695
    %v419 = vpow.pop %v418
    %420 = vset.pattern.permute.xlu0 2
    %421 = vperm.xlu0 %420, %v286
    %v422 = vpop.permute.xlu0 %421
    %424 = vset.pattern.permute.xlu0 2
    %425 = vperm.xlu0 %424, %v289
    %v426 = vpop.permute.xlu0 %425
    %428 = vset.pattern.permute.xlu0 10
    %429 = vperm.xlu0 %428, %v286
    %v430 = vpop.permute.xlu0 %429
    %432 = vset.pattern.permute.xlu0 10
    %433 = vperm.xlu0 %432, %v289
    %v434 = vpop.permute.xlu0 %433
    %v436 = vsel %vm58, %v422, %v430
    %v437 = vsel %vm58, %v426, %v434
    %438 = vset.pattern.permute.xlu0 2
    %439 = vperm.xlu0 %438, %v292
    %v440 = vpop.permute.xlu0 %439
    %442 = vset.pattern.permute.xlu0 2
    %443 = vperm.xlu0 %442, %v295
    %v444 = vpop.permute.xlu0 %443
    %446 = vset.pattern.permute.xlu0 10
    %447 = vperm.xlu0 %446, %v292
    %v448 = vpop.permute.xlu0 %447
    %450 = vset.pattern.permute.xlu0 10
    %451 = vperm.xlu0 %450, %v295
    %v452 = vpop.permute.xlu0 %451
    %v454 = vsel %vm58, %v440, %v448
    %v455 = vsel %vm58, %v444, %v452
    %v456 = vperm.slane %v306, 2
    %v457 = vmul.f32 %v436, %v456
    %v458 = vmul.f32 %v437, %v456
    %v459 = vperm.slane %v305, 3
    %v460 = vmul.f32 %v459, %v315
    %v461 = vmul.f32 %v459, %v316
    %v462 = vmul.f32 %v460, 1.442695
    %v463 = vpow.pop %v462
    %v464 = vmul.f32 %v461, 1.442695
    %v465 = vpow.pop %v464
    %466 = vset.pattern.permute.xlu0 3
    %467 = vperm.xlu0 %466, %v286
    %v468 = vpop.permute.xlu0 %467
    %470 = vset.pattern.permute.xlu0 3
    %471 = vperm.xlu0 %470, %v289
    %v472 = vpop.permute.xlu0 %471
    %474 = vset.pattern.permute.xlu0 11
    %475 = vperm.xlu0 %474, %v286
    %v476 = vpop.permute.xlu0 %475
    %478 = vset.pattern.permute.xlu0 11
    %479 = vperm.xlu0 %478, %v289
    %v480 = vpop.permute.xlu0 %479
    %v482 = vsel %vm58, %v468, %v476
    %v483 = vsel %vm58, %v472, %v480
    %484 = vset.pattern.permute.xlu0 3
    %485 = vperm.xlu0 %484, %v292
    %v486 = vpop.permute.xlu0 %485
    %488 = vset.pattern.permute.xlu0 3
    %489 = vperm.xlu0 %488, %v295
    %v490 = vpop.permute.xlu0 %489
    %492 = vset.pattern.permute.xlu0 11
    %493 = vperm.xlu0 %492, %v292
    %v494 = vpop.permute.xlu0 %493
    %496 = vset.pattern.permute.xlu0 11
    %497 = vperm.xlu0 %496, %v295
    %v498 = vpop.permute.xlu0 %497
    %v500 = vsel %vm58, %v486, %v494
    %v501 = vsel %vm58, %v490, %v498
    %v502 = vperm.slane %v306, 3
    %v503 = vmul.f32 %v482, %v502
    %v504 = vmul.f32 %v483, %v502
    %v505 = vperm.slane %v305, 4
    %v506 = vmul.f32 %v505, %v315
    %v507 = vmul.f32 %v505, %v316
    %v508 = vmul.f32 %v506, 1.442695
    %v509 = vpow.pop %v508
    %v510 = vmul.f32 %v507, 1.442695
    %v511 = vpow.pop %v510
    %512 = vset.pattern.permute.xlu0 4
    %513 = vperm.xlu0 %512, %v286
    %v514 = vpop.permute.xlu0 %513
    %516 = vset.pattern.permute.xlu0 4
    %517 = vperm.xlu0 %516, %v289
    %v518 = vpop.permute.xlu0 %517
    %520 = vset.pattern.permute.xlu0 12
    %521 = vperm.xlu0 %520, %v286
    %v522 = vpop.permute.xlu0 %521
    %524 = vset.pattern.permute.xlu0 12
    %525 = vperm.xlu0 %524, %v289
    %v526 = vpop.permute.xlu0 %525
    %v528 = vsel %vm58, %v514, %v522
    %v529 = vsel %vm58, %v518, %v526
    %530 = vset.pattern.permute.xlu0 4
    %531 = vperm.xlu0 %530, %v292
    %v532 = vpop.permute.xlu0 %531
    %534 = vset.pattern.permute.xlu0 4
    %535 = vperm.xlu0 %534, %v295
    %v536 = vpop.permute.xlu0 %535
    %538 = vset.pattern.permute.xlu0 12
    %539 = vperm.xlu0 %538, %v292
    %v540 = vpop.permute.xlu0 %539
    %542 = vset.pattern.permute.xlu0 12
    %543 = vperm.xlu0 %542, %v295
    %v544 = vpop.permute.xlu0 %543
    %v546 = vsel %vm58, %v532, %v540
    %v547 = vsel %vm58, %v536, %v544
    %v548 = vperm.slane %v306, 4
    %v549 = vmul.f32 %v528, %v548
    %v550 = vmul.f32 %v529, %v548
    %v551 = vperm.slane %v305, 5
    %v552 = vmul.f32 %v551, %v315
    %v553 = vmul.f32 %v551, %v316
    %v554 = vmul.f32 %v552, 1.442695
    %v555 = vpow.pop %v554
    %v556 = vmul.f32 %v553, 1.442695
    %v557 = vpow.pop %v556
    %558 = vset.pattern.permute.xlu0 5
    %559 = vperm.xlu0 %558, %v286
    %v560 = vpop.permute.xlu0 %559
    %562 = vset.pattern.permute.xlu0 5
    %563 = vperm.xlu0 %562, %v289
    %v564 = vpop.permute.xlu0 %563
    %566 = vset.pattern.permute.xlu0 13
    %567 = vperm.xlu0 %566, %v286
    %v568 = vpop.permute.xlu0 %567
    %570 = vset.pattern.permute.xlu0 13
    %571 = vperm.xlu0 %570, %v289
    %v572 = vpop.permute.xlu0 %571
    %v574 = vsel %vm58, %v560, %v568
    %v575 = vsel %vm58, %v564, %v572
    %576 = vset.pattern.permute.xlu0 5
    %577 = vperm.xlu0 %576, %v292
    %v578 = vpop.permute.xlu0 %577
    %580 = vset.pattern.permute.xlu0 5
    %581 = vperm.xlu0 %580, %v295
    %v582 = vpop.permute.xlu0 %581
    %584 = vset.pattern.permute.xlu0 13
    %585 = vperm.xlu0 %584, %v292
    %v586 = vpop.permute.xlu0 %585
    %588 = vset.pattern.permute.xlu0 13
    %589 = vperm.xlu0 %588, %v295
    %v590 = vpop.permute.xlu0 %589
    %v592 = vsel %vm58, %v578, %v586
    %v593 = vsel %vm58, %v582, %v590
    %v594 = vperm.slane %v306, 5
    %v595 = vmul.f32 %v574, %v594
    %v596 = vmul.f32 %v575, %v594
    %v597 = vperm.slane %v305, 6
    %v598 = vmul.f32 %v597, %v315
    %v599 = vmul.f32 %v597, %v316
    %v600 = vmul.f32 %v598, 1.442695
    %v601 = vpow.pop %v600
    %v602 = vmul.f32 %v599, 1.442695
    %v603 = vpow.pop %v602
    %604 = vset.pattern.permute.xlu0 6
    %605 = vperm.xlu0 %604, %v286
    %v606 = vpop.permute.xlu0 %605
    %608 = vset.pattern.permute.xlu0 6
    %609 = vperm.xlu0 %608, %v289
    %v610 = vpop.permute.xlu0 %609
    %612 = vset.pattern.permute.xlu0 14
    %613 = vperm.xlu0 %612, %v286
    %v614 = vpop.permute.xlu0 %613
    %616 = vset.pattern.permute.xlu0 14
    %617 = vperm.xlu0 %616, %v289
    %v618 = vpop.permute.xlu0 %617
    %v620 = vsel %vm58, %v606, %v614
    %v621 = vsel %vm58, %v610, %v618
    %622 = vset.pattern.permute.xlu0 6
    %623 = vperm.xlu0 %622, %v292
    %v624 = vpop.permute.xlu0 %623
    %626 = vset.pattern.permute.xlu0 6
    %627 = vperm.xlu0 %626, %v295
    %v628 = vpop.permute.xlu0 %627
    %630 = vset.pattern.permute.xlu0 14
    %631 = vperm.xlu0 %630, %v292
    %v632 = vpop.permute.xlu0 %631
    %634 = vset.pattern.permute.xlu0 14
    %635 = vperm.xlu0 %634, %v295
    %v636 = vpop.permute.xlu0 %635
    %v638 = vsel %vm58, %v624, %v632
    %v639 = vsel %vm58, %v628, %v636
    %v640 = vperm.slane %v306, 6
    %v641 = vmul.f32 %v620, %v640
    %v642 = vmul.f32 %v621, %v640
    %v643 = vperm.slane %v305, 7
    %v644 = vmul.f32 %v643, %v315
    %v645 = vmul.f32 %v643, %v316
    %v646 = vmul.f32 %v644, 1.442695
    %v647 = vpow.pop %v646
    %v648 = vmul.f32 %v645, 1.442695
    %v649 = vpow.pop %v648
    %650 = vset.pattern.permute.xlu0 7
    %651 = vperm.xlu0 %650, %v286
    %v652 = vpop.permute.xlu0 %651
    %654 = vset.pattern.permute.xlu0 7
    %655 = vperm.xlu0 %654, %v289
    %v656 = vpop.permute.xlu0 %655
    %658 = vset.pattern.permute.xlu0 15
    %659 = vperm.xlu0 %658, %v286
    %v660 = vpop.permute.xlu0 %659
    %662 = vset.pattern.permute.xlu0 15
    %663 = vperm.xlu0 %662, %v289
    %v664 = vpop.permute.xlu0 %663
    %v666 = vsel %vm58, %v652, %v660
    %v667 = vsel %vm58, %v656, %v664
    %668 = vset.pattern.permute.xlu0 7
    %669 = vperm.xlu0 %668, %v292
    %v670 = vpop.permute.xlu0 %669
    %672 = vset.pattern.permute.xlu0 7
    %673 = vperm.xlu0 %672, %v295
    %v674 = vpop.permute.xlu0 %673
    %676 = vset.pattern.permute.xlu0 15
    %677 = vperm.xlu0 %676, %v292
    %v678 = vpop.permute.xlu0 %677
    %680 = vset.pattern.permute.xlu0 15
    %681 = vperm.xlu0 %680, %v295
    %v682 = vpop.permute.xlu0 %681
    %v684 = vsel %vm58, %v670, %v678
    %v685 = vsel %vm58, %v674, %v682
    %v686 = vperm.slane %v306, 7
    %v687 = vmul.f32 %v666, %v686
    %v688 = vmul.f32 %v667, %v686
    %v689 = vmul.f32 %v321, 0.0
    %v690 = vmul.f32 %v323, 0.0
    %v691 = vadd.f32 %v689, %v365
    %v692 = vadd.f32 %v690, %v366
    %v693 = vmul.f32 %v362, %v691
    %v694 = vmul.f32 %v363, %v692
    %v695 = vadd.f32 %v693, %v694
    %v696 = vrot.slane %v695, 4
    %v697 = vadd.f32 %v695, %v696
    %v698 = vrot.slane %v697, 2
    %v699 = vadd.f32 %v697, %v698
    %v700 = vrot.slane %v699, 1
    %v701 = vadd.f32 %v699, %v700
    %v702 = vmul.f32 %v371, %v691
    %v703 = vmul.f32 %v373, %v692
    %v704 = vadd.f32 %v702, %v411
    %v705 = vadd.f32 %v703, %v412
    %v706 = vmul.f32 %v408, %v704
    %v707 = vmul.f32 %v409, %v705
    %v708 = vadd.f32 %v706, %v707
    %v709 = vrot.slane %v708, 4
    %v710 = vadd.f32 %v708, %v709
    %v711 = vrot.slane %v710, 2
    %v712 = vadd.f32 %v710, %v711
    %v713 = vrot.slane %v712, 1
    %v714 = vadd.f32 %v712, %v713
    %v715 = vmul.f32 %v417, %v704
    %v716 = vmul.f32 %v419, %v705
    %v717 = vadd.f32 %v715, %v457
    %v718 = vadd.f32 %v716, %v458
    %v719 = vmul.f32 %v454, %v717
    %v720 = vmul.f32 %v455, %v718
    %v721 = vadd.f32 %v719, %v720
    %v722 = vrot.slane %v721, 4
    %v723 = vadd.f32 %v721, %v722
    %v724 = vrot.slane %v723, 2
    %v725 = vadd.f32 %v723, %v724
    %v726 = vrot.slane %v725, 1
    %v727 = vadd.f32 %v725, %v726
    %v728 = vmul.f32 %v463, %v717
    %v729 = vmul.f32 %v465, %v718
    %v730 = vadd.f32 %v728, %v503
    %v731 = vadd.f32 %v729, %v504
    %v732 = vmul.f32 %v500, %v730
    %v733 = vmul.f32 %v501, %v731
    %v734 = vadd.f32 %v732, %v733
    %v735 = vrot.slane %v734, 4
    %v736 = vadd.f32 %v734, %v735
    %v737 = vrot.slane %v736, 2
    %v738 = vadd.f32 %v736, %v737
    %v739 = vrot.slane %v738, 1
    %v740 = vadd.f32 %v738, %v739
    %v741 = vmul.f32 %v509, %v730
    %v742 = vmul.f32 %v511, %v731
    %v743 = vadd.f32 %v741, %v549
    %v744 = vadd.f32 %v742, %v550
    %v745 = vmul.f32 %v546, %v743
    %v746 = vmul.f32 %v547, %v744
    %v747 = vadd.f32 %v745, %v746
    %v748 = vrot.slane %v747, 4
    %v749 = vadd.f32 %v747, %v748
    %v750 = vrot.slane %v749, 2
    %v751 = vadd.f32 %v749, %v750
    %v752 = vrot.slane %v751, 1
    %v753 = vadd.f32 %v751, %v752
    %v754 = vmul.f32 %v555, %v743
    %v755 = vmul.f32 %v557, %v744
    %v756 = vadd.f32 %v754, %v595
    %v757 = vadd.f32 %v755, %v596
    %v758 = vmul.f32 %v592, %v756
    %v759 = vmul.f32 %v593, %v757
    %v760 = vadd.f32 %v758, %v759
    %v761 = vrot.slane %v760, 4
    %v762 = vadd.f32 %v760, %v761
    %v763 = vrot.slane %v762, 2
    %v764 = vadd.f32 %v762, %v763
    %v765 = vrot.slane %v764, 1
    %v766 = vadd.f32 %v764, %v765
    %v767 = vmul.f32 %v601, %v756
    %v768 = vmul.f32 %v603, %v757
    %v769 = vadd.f32 %v767, %v641
    %v770 = vadd.f32 %v768, %v642
    %v771 = vmul.f32 %v638, %v769
    %v772 = vmul.f32 %v639, %v770
    %v773 = vadd.f32 %v771, %v772
    %v774 = vrot.slane %v773, 4
    %v775 = vadd.f32 %v773, %v774
    %v776 = vrot.slane %v775, 2
    %v777 = vadd.f32 %v775, %v776
    %v778 = vrot.slane %v777, 1
    %v779 = vadd.f32 %v777, %v778
    %v780 = vmul.f32 %v647, %v769
    %v781 = vmul.f32 %v649, %v770
    %v782 = vadd.f32 %v780, %v687
    %v783 = vadd.f32 %v781, %v688
    %v784 = vmul.f32 %v684, %v782
    %v785 = vmul.f32 %v685, %v783
    %v786 = vadd.f32 %v784, %v785
    %v787 = vrot.slane %v786, 4
    %v788 = vadd.f32 %v786, %v787
    %v789 = vrot.slane %v788, 2
    %v790 = vadd.f32 %v788, %v789
    %v791 = vrot.slane %v790, 1
    %v792 = vadd.f32 %v790, %v791
    %vm793 = vcmask 1040384
    %v794 = vsel %vm793, %v701, %v714
    %vm795 = vcmask 1041408
    %v796 = vsel %vm795, %v794, %v727
    %vm797 = vcmask 1042432
    %v798 = vsel %vm797, %v796, %v740
    %vm799 = vcmask 1043456
    %v800 = vsel %vm799, %v798, %v753
    %vm801 = vcmask 1044480
    %v802 = vsel %vm801, %v800, %v766
    %vm803 = vcmask 1045504
    %v804 = vsel %vm803, %v802, %v779
    %vm805 = vcmask 1046528
    %v806 = vsel %vm805, %v804, %v792
    %808 = vrot.lane.b32.xlu0 %v84, 64
    %v809 = vpop.permute.xlu0 %808
    %v811 = vsel %vm58, %v84, %v809
    %v812 = vperm.slane %v811, 0
    %v813 = vmul.f32 %v812, %v300
    %v814 = vadd.f32 %v806, %v813
    %v815 = vmul.f32 %v814, %v79
    %s816 = scalar_lea.vmem %s2, 120
    %v817 = vld [vmem:[%s816 + $0x4] sm:$0x1]
    %v818 = vld [vmem:[%s816 + $0x5] sm:$0x1]
    %v819 = vld [vmem:[%s816 + $0x6] sm:$0x1]
    %v820 = vld [vmem:[%s816 + $0x8] sm:$0xff]
    %v821 = vld [vmem:[%s816 + $0x10] sm:$0xff]
    %v822 = vld [vmem:[%s816 + $0x18] sm:$0xff]
    %v823 = vld [vmem:[%s816 + $0x20] sm:$0xff]
    %v824 = vld [vmem:[%s816 + $0x28] sm:$0xff]
    %v825 = vld [vmem:[%s816 + $0x30] sm:$0xff]
    %v826 = vld [vmem:[%s816 + $0x38] sm:$0xff]
    %v827 = vld [vmem:[%s816 + $0x40] sm:$0xff]
    %v828 = vld [vmem:[%s816 + $0x48] sm:$0xff]
    %v829 = vld [vmem:[%s816 + $0x50] sm:$0xff]
    %v830 = vld [vmem:[%s816 + $0x58] sm:$0xff]
    %v831 = vld [vmem:[%s816 + $0x60] sm:$0xff]
    %v832 = vld [vmem:[%s816 + $0x68] sm:$0xff]
    %v833 = vld [vmem:[%s816 + $0x70] sm:$0xff]
    %v834 = vld [vmem:[%s816] sm:$0x1]
    %vm835 = vcmp.lt.s32.totalorder %v81, 5
    %v836 = vrot.slane %v49, 3
    %v837 = vrot.slane %v52, 3
    %v838 = vsel %vm835, %v836, %v837
    %v839 = vsel %vm835, %v837, %v836
    %v840 = vsel %vm835, %v838, 0.0
    %v841 = vsel %vm835, %v839, 0.0
    %v842 = vperm.slane %v834, 0
    %v843 = vmul.f32 %v840, %v842
    %v844 = vmul.f32 %v841, %v842
    %v845 = vadd.f32 %v843, 0.0
    %v846 = vadd.f32 %v844, 0.0
    %v847 = vld [vmem:[%s816 + $0x1] sm:$0x1]
    %vm848 = vcmp.lt.s32.totalorder %v81, 6
    %v849 = vrot.slane %v49, 2
    %v850 = vrot.slane %v52, 2
    %v851 = vsel %vm848, %v849, %v850
    %v852 = vsel %vm848, %v850, %v849
    %v853 = vsel %vm848, %v851, 0.0
    %v854 = vsel %vm848, %v852, 0.0
    %v855 = vperm.slane %v847, 0
    %v856 = vmul.f32 %v853, %v855
    %v857 = vmul.f32 %v854, %v855
    %v858 = vadd.f32 %v845, %v856
    %v859 = vadd.f32 %v846, %v857
    %v860 = vld [vmem:[%s816 + $0x2] sm:$0x1]
    %vm861 = vcmp.lt.s32.totalorder %v81, 7
    %v862 = vrot.slane %v49, 1
    %v863 = vrot.slane %v52, 1
    %v864 = vsel %vm861, %v862, %v863
    %v865 = vsel %vm861, %v863, %v862
    %v866 = vsel %vm861, %v864, 0.0
    %v867 = vsel %vm861, %v865, 0.0
    %v868 = vperm.slane %v860, 0
    %v869 = vmul.f32 %v866, %v868
    %v870 = vmul.f32 %v867, %v868
    %v871 = vadd.f32 %v858, %v869
    %v872 = vadd.f32 %v859, %v870
    %v873 = vld [vmem:[%s816 + $0x3] sm:$0x1]
    %v874 = vperm.slane %v873, 0
    %v875 = vmul.f32 %v49, %v874
    %v876 = vmul.f32 %v52, %v874
    %v877 = vadd.f32 %v871, %v875
    %v878 = vadd.f32 %v872, %v876
    %v879 = vperm.slane %v817, 0
    %v880 = vadd.f32 %v877, %v879
    %v881 = vadd.f32 %v878, %v879
    %v882 = vxor.u32 %v880, 2147483648
    %v883 = vxor.u32 %v881, 2147483648
    %v884 = vmul.f32 %v882, 1.442695
    %v885 = vpow.pop %v884
    %v886 = vmul.f32 %v883, 1.442695
    %v887 = vpow.pop %v886
    %v888 = vadd.f32 %v885, 1.0
    %v889 = vadd.f32 %v887, 1.0
    %v890 = vrcp.pop %v888
    %v891 = vmul.f32 %v888, %v890
    %v892 = vsub.f32 1.0, %v891
    %v893 = vmul.f32 %v890, %v892
    %v894 = vadd.f32 %v890, %v893
    %vm895 = vweird.f32 %v888
    %vm896 = vweird.f32 %v890
    %vm897 = vmor %vm895, %vm896
    %v898 = vsel %vm897, %v890, %v894
    %v899 = vand.u32 2147483647, %v888
    %vm900 = vcmp.eq.f32.partialorder %v899, 8.507059e+37
    %v901 = vand.u32 %v888, 2147483648
    %v902 = vor.u32 1.1754944e-38, %v901
    %v903 = vsel %vm900, %v902, %v898
    %v904 = vmul.f32 1.0, %v903
    %v905 = vrcp.pop %v889
    %v906 = vmul.f32 %v889, %v905
    %v907 = vsub.f32 1.0, %v906
    %v908 = vmul.f32 %v905, %v907
    %v909 = vadd.f32 %v905, %v908
    %vm910 = vweird.f32 %v889
    %vm911 = vweird.f32 %v905
    %vm912 = vmor %vm910, %vm911
    %v913 = vsel %vm912, %v905, %v909
    %v914 = vand.u32 2147483647, %v889
    %vm915 = vcmp.eq.f32.partialorder %v914, 8.507059e+37
    %v916 = vand.u32 %v889, 2147483648
    %v917 = vor.u32 1.1754944e-38, %v916
    %v918 = vsel %vm915, %v917, %v913
    %v919 = vmul.f32 1.0, %v918
    %v920 = vmul.f32 %v880, %v904
    %v921 = vmul.f32 %v881, %v919
    %v922 = vperm.slane %v818, 0
    %v924 = vsel %vm58, %v920, 0
    %v927 = vsel %vm58, %v921, 0
    %929 = vmatpush.msra.mxu0 0.0
    %930 = vmatpush.msra.mxu0 0.0
    %931 = vmatpush.msra.mxu0 0.0
    %932 = vmatpush.msra.mxu0 0.0
    %933 = vmatpush.msra.mxu0 0.0
    %934 = vmatpush.msra.mxu0 0.0
    %935 = vmatpush.msra.mxu0 0.0
    %936 = vmatpush.msra.mxu0 0.0
    %937 = vmatpush.msra.mxu0 %v827
    %938 = vmatpush.msra.mxu0 %v826
    %939 = vmatpush.msra.mxu0 %v825
    %940 = vmatpush.msra.mxu0 %v824
    %941 = vmatpush.msra.mxu0 %v823
    %942 = vmatpush.msra.mxu0 %v822
    %943 = vmatpush.msra.mxu0 %v821
    %944 = vmatpush.msra.mxu0 %v820
    %945 = vmatmul.f32.gmra.mxu0 %v924
    %v946 = vpop.f32.mrf.mxu0
    %v947 = vadd.f32 %v922, %v946
    %948 = vmatmul.f32.gmra.mxu0 %v927
    %v949 = vpop.f32.mrf.mxu0
    %v950 = vadd.f32 %v922, %v949
    %951 = vdwg.mxu0
    %v952 = vmax.f32 %v947, 0.0
    %v953 = vmax.f32 %v950, 0.0
    %vm954 = vcmp.ne.f32.partialorder %v947, %v947
    %vm955 = vcmp.ne.f32.partialorder %v950, %v950
    %v956 = vadd.f32 %v947, 0.0
    %v957 = vadd.f32 %v950, 0.0
    %v958 = vand.u32 2147483647, %v947
    %v959 = vand.u32 2147483647, %v950
    %v960 = vsub.f32 0.0, %v958
    %v961 = vsub.f32 0.0, %v959
    %v962 = vmul.f32 %v960, 1.442695
    %v963 = vpow.pop %v962
    %v964 = vmul.f32 %v961, 1.442695
    %v965 = vpow.pop %v964
    %v966 = vadd.f32 %v963, 1.0
    %v967 = vlog2.pop %v966
    %v968 = vmul.f32 %v967, 0.6931472
    %v969 = vmul.f32 -0.5, %v963
    %v970 = vadd.f32 %v969, 1.0
    %v971 = vmul.f32 %v970, %v963
    %v972 = vand.u32 2147483647, %v963
    %vm973 = vcmp.lt.f32.partialorder %v972, 0.0004427343
    %v974 = vsel %vm973, %v971, %v968
    %v975 = vadd.f32 %v965, 1.0
    %v976 = vlog2.pop %v975
    %v977 = vmul.f32 %v976, 0.6931472
    %v978 = vmul.f32 -0.5, %v965
    %v979 = vadd.f32 %v978, 1.0
    %v980 = vmul.f32 %v979, %v965
    %v981 = vand.u32 2147483647, %v965
    %vm982 = vcmp.lt.f32.partialorder %v981, 0.0004427343
    %v983 = vsel %vm982, %v980, %v977
    %v984 = vadd.f32 %v952, %v974
    %v985 = vadd.f32 %v953, %v983
    %v986 = vsel %vm954, %v956, %v984
    %v987 = vsel %vm955, %v957, %v985
    %v989 = vsel %vm58, %v828, 0
    %v992 = vsel %vm58, %v829, 0
    %v995 = vsel %vm58, %v830, 0
    %v998 = vsel %vm58, %v831, 0
    %1000 = vmatpush.xpose.msra.mxu0 0.0
    %1001 = vmatpush.xpose.msra.mxu0 0.0
    %1002 = vmatpush.xpose.msra.mxu0 0.0
    %1003 = vmatpush.xpose.msra.mxu0 0.0
    %1004 = vmatpush.xpose.msra.mxu0 0.0
    %1005 = vmatpush.xpose.msra.mxu0 0.0
    %1006 = vmatpush.xpose.msra.mxu0 0.0
    %1007 = vmatpush.xpose.msra.mxu0 0.0
    %1008 = vmatpush.xpose.msra.mxu0 0.0
    %1009 = vmatpush.xpose.msra.mxu0 0.0
    %1010 = vmatpush.xpose.msra.mxu0 0.0
    %1011 = vmatpush.xpose.msra.mxu0 0.0
    %1012 = vmatpush.xpose.msra.mxu0 0.0
    %1013 = vmatpush.xpose.msra.mxu0 0.0
    %1014 = vmatpush.xpose.msra.mxu0 %v927
    %1015 = vmatpush.xpose.msra.mxu0 %v924
    %1016 = vmatmul.f32.gmra.mxu0 %v989
    %v1017 = vpop.f32.mrf.mxu0
    %v1018 = vadd.f32 0.0, %v1017
    %1019 = vmatmul.f32.gmra.mxu0 %v992
    %v1020 = vpop.f32.mrf.mxu0
    %v1021 = vadd.f32 0.0, %v1020
    %1022 = vmatmul.f32.gmra.mxu0 %v995
    %v1023 = vpop.f32.mrf.mxu0
    %v1024 = vadd.f32 0.0, %v1023
    %1025 = vmatmul.f32.gmra.mxu0 %v998
    %v1026 = vpop.f32.mrf.mxu0
    %v1027 = vadd.f32 0.0, %v1026
    %1028 = vdwg.mxu0
    %1029 = vrot.lane.b32.xlu0 %v921, 64
    %v1030 = vpop.permute.xlu0 %1029
    %v1032 = vsel %vm58, %v920, %v1030
    %1034 = vrot.lane.b32.xlu0 %v987, 64
    %v1035 = vpop.permute.xlu0 %1034
    %v1037 = vsel %vm58, %v986, %v1035
    %v1038 = vmul.f32 %v1037, %v1032
    %1041 = vrot.lane.b32.xlu0 %v832, 64
    %v1042 = vpop.permute.xlu0 %1041
    %1043 = vrot.lane.b32.xlu0 %v833, 64
    %v1044 = vpop.permute.xlu0 %1043
    %v1047 = vsel %vm58, %v832, %v1042
    %v1048 = vsel %vm58, %v833, %v1044
    %v1049 = vperm.slane %v1037, 0
    %v1050 = vmul.f32 %v1049, %v1047
    %v1051 = vmul.f32 %v1049, %v1048
    %v1052 = vmul.f32 %v1050, 1.442695
    %v1053 = vpow.pop %v1052
    %v1054 = vmul.f32 %v1051, 1.442695
    %v1055 = vpow.pop %v1054
    %1057 = vset.pattern.permute.xlu0 0
    %1058 = vperm.xlu0 %1057, %v1018
    %v1059 = vpop.permute.xlu0 %1058
    %1062 = vset.pattern.permute.xlu0 0
    %1063 = vperm.xlu0 %1062, %v1021
    %v1064 = vpop.permute.xlu0 %1063
    %1066 = vset.pattern.permute.xlu0 8
    %1067 = vperm.xlu0 %1066, %v1018
    %v1068 = vpop.permute.xlu0 %1067
    %1070 = vset.pattern.permute.xlu0 8
    %1071 = vperm.xlu0 %1070, %v1021
    %v1072 = vpop.permute.xlu0 %1071
    %v1074 = vsel %vm58, %v1059, %v1068
    %v1075 = vsel %vm58, %v1064, %v1072
    %1077 = vset.pattern.permute.xlu0 0
    %1078 = vperm.xlu0 %1077, %v1024
    %v1079 = vpop.permute.xlu0 %1078
    %1082 = vset.pattern.permute.xlu0 0
    %1083 = vperm.xlu0 %1082, %v1027
    %v1084 = vpop.permute.xlu0 %1083
    %1086 = vset.pattern.permute.xlu0 8
    %1087 = vperm.xlu0 %1086, %v1024
    %v1088 = vpop.permute.xlu0 %1087
    %1090 = vset.pattern.permute.xlu0 8
    %1091 = vperm.xlu0 %1090, %v1027
    %v1092 = vpop.permute.xlu0 %1091
    %v1094 = vsel %vm58, %v1079, %v1088
    %v1095 = vsel %vm58, %v1084, %v1092
    %v1096 = vperm.slane %v1038, 0
    %v1097 = vmul.f32 %v1074, %v1096
    %v1098 = vmul.f32 %v1075, %v1096
    %v1099 = vperm.slane %v1037, 1
    %v1100 = vmul.f32 %v1099, %v1047
    %v1101 = vmul.f32 %v1099, %v1048
    %v1102 = vmul.f32 %v1100, 1.442695
    %v1103 = vpow.pop %v1102
    %v1104 = vmul.f32 %v1101, 1.442695
    %v1105 = vpow.pop %v1104
    %1106 = vset.pattern.permute.xlu0 1
    %1107 = vperm.xlu0 %1106, %v1018
    %v1108 = vpop.permute.xlu0 %1107
    %1110 = vset.pattern.permute.xlu0 1
    %1111 = vperm.xlu0 %1110, %v1021
    %v1112 = vpop.permute.xlu0 %1111
    %1114 = vset.pattern.permute.xlu0 9
    %1115 = vperm.xlu0 %1114, %v1018
    %v1116 = vpop.permute.xlu0 %1115
    %1118 = vset.pattern.permute.xlu0 9
    %1119 = vperm.xlu0 %1118, %v1021
    %v1120 = vpop.permute.xlu0 %1119
    %v1122 = vsel %vm58, %v1108, %v1116
    %v1123 = vsel %vm58, %v1112, %v1120
    %1124 = vset.pattern.permute.xlu0 1
    %1125 = vperm.xlu0 %1124, %v1024
    %v1126 = vpop.permute.xlu0 %1125
    %1128 = vset.pattern.permute.xlu0 1
    %1129 = vperm.xlu0 %1128, %v1027
    %v1130 = vpop.permute.xlu0 %1129
    %1132 = vset.pattern.permute.xlu0 9
    %1133 = vperm.xlu0 %1132, %v1024
    %v1134 = vpop.permute.xlu0 %1133
    %1136 = vset.pattern.permute.xlu0 9
    %1137 = vperm.xlu0 %1136, %v1027
    %v1138 = vpop.permute.xlu0 %1137
    %v1140 = vsel %vm58, %v1126, %v1134
    %v1141 = vsel %vm58, %v1130, %v1138
    %v1142 = vperm.slane %v1038, 1
    %v1143 = vmul.f32 %v1122, %v1142
    %v1144 = vmul.f32 %v1123, %v1142
    %v1145 = vperm.slane %v1037, 2
    %v1146 = vmul.f32 %v1145, %v1047
    %v1147 = vmul.f32 %v1145, %v1048
    %v1148 = vmul.f32 %v1146, 1.442695
    %v1149 = vpow.pop %v1148
    %v1150 = vmul.f32 %v1147, 1.442695
    %v1151 = vpow.pop %v1150
    %1152 = vset.pattern.permute.xlu0 2
    %1153 = vperm.xlu0 %1152, %v1018
    %v1154 = vpop.permute.xlu0 %1153
    %1156 = vset.pattern.permute.xlu0 2
    %1157 = vperm.xlu0 %1156, %v1021
    %v1158 = vpop.permute.xlu0 %1157
    %1160 = vset.pattern.permute.xlu0 10
    %1161 = vperm.xlu0 %1160, %v1018
    %v1162 = vpop.permute.xlu0 %1161
    %1164 = vset.pattern.permute.xlu0 10
    %1165 = vperm.xlu0 %1164, %v1021
    %v1166 = vpop.permute.xlu0 %1165
    %v1168 = vsel %vm58, %v1154, %v1162
    %v1169 = vsel %vm58, %v1158, %v1166
    %1170 = vset.pattern.permute.xlu0 2
    %1171 = vperm.xlu0 %1170, %v1024
    %v1172 = vpop.permute.xlu0 %1171
    %1174 = vset.pattern.permute.xlu0 2
    %1175 = vperm.xlu0 %1174, %v1027
    %v1176 = vpop.permute.xlu0 %1175
    %1178 = vset.pattern.permute.xlu0 10
    %1179 = vperm.xlu0 %1178, %v1024
    %v1180 = vpop.permute.xlu0 %1179
    %1182 = vset.pattern.permute.xlu0 10
    %1183 = vperm.xlu0 %1182, %v1027
    %v1184 = vpop.permute.xlu0 %1183
    %v1186 = vsel %vm58, %v1172, %v1180
    %v1187 = vsel %vm58, %v1176, %v1184
    %v1188 = vperm.slane %v1038, 2
    %v1189 = vmul.f32 %v1168, %v1188
    %v1190 = vmul.f32 %v1169, %v1188
    %v1191 = vperm.slane %v1037, 3
    %v1192 = vmul.f32 %v1191, %v1047
    %v1193 = vmul.f32 %v1191, %v1048
    %v1194 = vmul.f32 %v1192, 1.442695
    %v1195 = vpow.pop %v1194
    %v1196 = vmul.f32 %v1193, 1.442695
    %v1197 = vpow.pop %v1196
    %1198 = vset.pattern.permute.xlu0 3
    %1199 = vperm.xlu0 %1198, %v1018
    %v1200 = vpop.permute.xlu0 %1199
    %1202 = vset.pattern.permute.xlu0 3
    %1203 = vperm.xlu0 %1202, %v1021
    %v1204 = vpop.permute.xlu0 %1203
    %1206 = vset.pattern.permute.xlu0 11
    %1207 = vperm.xlu0 %1206, %v1018
    %v1208 = vpop.permute.xlu0 %1207
    %1210 = vset.pattern.permute.xlu0 11
    %1211 = vperm.xlu0 %1210, %v1021
    %v1212 = vpop.permute.xlu0 %1211
    %v1214 = vsel %vm58, %v1200, %v1208
    %v1215 = vsel %vm58, %v1204, %v1212
    %1216 = vset.pattern.permute.xlu0 3
    %1217 = vperm.xlu0 %1216, %v1024
    %v1218 = vpop.permute.xlu0 %1217
    %1220 = vset.pattern.permute.xlu0 3
    %1221 = vperm.xlu0 %1220, %v1027
    %v1222 = vpop.permute.xlu0 %1221
    %1224 = vset.pattern.permute.xlu0 11
    %1225 = vperm.xlu0 %1224, %v1024
    %v1226 = vpop.permute.xlu0 %1225
    %1228 = vset.pattern.permute.xlu0 11
    %1229 = vperm.xlu0 %1228, %v1027
    %v1230 = vpop.permute.xlu0 %1229
    %v1232 = vsel %vm58, %v1218, %v1226
    %v1233 = vsel %vm58, %v1222, %v1230
    %v1234 = vperm.slane %v1038, 3
    %v1235 = vmul.f32 %v1214, %v1234
    %v1236 = vmul.f32 %v1215, %v1234
    %v1237 = vperm.slane %v1037, 4
    %v1238 = vmul.f32 %v1237, %v1047
    %v1239 = vmul.f32 %v1237, %v1048
    %v1240 = vmul.f32 %v1238, 1.442695
    %v1241 = vpow.pop %v1240
    %v1242 = vmul.f32 %v1239, 1.442695
    %v1243 = vpow.pop %v1242
    %1244 = vset.pattern.permute.xlu0 4
    %1245 = vperm.xlu0 %1244, %v1018
    %v1246 = vpop.permute.xlu0 %1245
    %1248 = vset.pattern.permute.xlu0 4
    %1249 = vperm.xlu0 %1248, %v1021
    %v1250 = vpop.permute.xlu0 %1249
    %1252 = vset.pattern.permute.xlu0 12
    %1253 = vperm.xlu0 %1252, %v1018
    %v1254 = vpop.permute.xlu0 %1253
    %1256 = vset.pattern.permute.xlu0 12
    %1257 = vperm.xlu0 %1256, %v1021
    %v1258 = vpop.permute.xlu0 %1257
    %v1260 = vsel %vm58, %v1246, %v1254
    %v1261 = vsel %vm58, %v1250, %v1258
    %1262 = vset.pattern.permute.xlu0 4
    %1263 = vperm.xlu0 %1262, %v1024
    %v1264 = vpop.permute.xlu0 %1263
    %1266 = vset.pattern.permute.xlu0 4
    %1267 = vperm.xlu0 %1266, %v1027
    %v1268 = vpop.permute.xlu0 %1267
    %1270 = vset.pattern.permute.xlu0 12
    %1271 = vperm.xlu0 %1270, %v1024
    %v1272 = vpop.permute.xlu0 %1271
    %1274 = vset.pattern.permute.xlu0 12
    %1275 = vperm.xlu0 %1274, %v1027
    %v1276 = vpop.permute.xlu0 %1275
    %v1278 = vsel %vm58, %v1264, %v1272
    %v1279 = vsel %vm58, %v1268, %v1276
    %v1280 = vperm.slane %v1038, 4
    %v1281 = vmul.f32 %v1260, %v1280
    %v1282 = vmul.f32 %v1261, %v1280
    %v1283 = vperm.slane %v1037, 5
    %v1284 = vmul.f32 %v1283, %v1047
    %v1285 = vmul.f32 %v1283, %v1048
    %v1286 = vmul.f32 %v1284, 1.442695
    %v1287 = vpow.pop %v1286
    %v1288 = vmul.f32 %v1285, 1.442695
    %v1289 = vpow.pop %v1288
    %1290 = vset.pattern.permute.xlu0 5
    %1291 = vperm.xlu0 %1290, %v1018
    %v1292 = vpop.permute.xlu0 %1291
    %1294 = vset.pattern.permute.xlu0 5
    %1295 = vperm.xlu0 %1294, %v1021
    %v1296 = vpop.permute.xlu0 %1295
    %1298 = vset.pattern.permute.xlu0 13
    %1299 = vperm.xlu0 %1298, %v1018
    %v1300 = vpop.permute.xlu0 %1299
    %1302 = vset.pattern.permute.xlu0 13
    %1303 = vperm.xlu0 %1302, %v1021
    %v1304 = vpop.permute.xlu0 %1303
    %v1306 = vsel %vm58, %v1292, %v1300
    %v1307 = vsel %vm58, %v1296, %v1304
    %1308 = vset.pattern.permute.xlu0 5
    %1309 = vperm.xlu0 %1308, %v1024
    %v1310 = vpop.permute.xlu0 %1309
    %1312 = vset.pattern.permute.xlu0 5
    %1313 = vperm.xlu0 %1312, %v1027
    %v1314 = vpop.permute.xlu0 %1313
    %1316 = vset.pattern.permute.xlu0 13
    %1317 = vperm.xlu0 %1316, %v1024
    %v1318 = vpop.permute.xlu0 %1317
    %1320 = vset.pattern.permute.xlu0 13
    %1321 = vperm.xlu0 %1320, %v1027
    %v1322 = vpop.permute.xlu0 %1321
    %v1324 = vsel %vm58, %v1310, %v1318
    %v1325 = vsel %vm58, %v1314, %v1322
    %v1326 = vperm.slane %v1038, 5
    %v1327 = vmul.f32 %v1306, %v1326
    %v1328 = vmul.f32 %v1307, %v1326
    %v1329 = vperm.slane %v1037, 6
    %v1330 = vmul.f32 %v1329, %v1047
    %v1331 = vmul.f32 %v1329, %v1048
    %v1332 = vmul.f32 %v1330, 1.442695
    %v1333 = vpow.pop %v1332
    %v1334 = vmul.f32 %v1331, 1.442695
    %v1335 = vpow.pop %v1334
    %1336 = vset.pattern.permute.xlu0 6
    %1337 = vperm.xlu0 %1336, %v1018
    %v1338 = vpop.permute.xlu0 %1337
    %1340 = vset.pattern.permute.xlu0 6
    %1341 = vperm.xlu0 %1340, %v1021
    %v1342 = vpop.permute.xlu0 %1341
    %1344 = vset.pattern.permute.xlu0 14
    %1345 = vperm.xlu0 %1344, %v1018
    %v1346 = vpop.permute.xlu0 %1345
    %1348 = vset.pattern.permute.xlu0 14
    %1349 = vperm.xlu0 %1348, %v1021
    %v1350 = vpop.permute.xlu0 %1349
    %v1352 = vsel %vm58, %v1338, %v1346
    %v1353 = vsel %vm58, %v1342, %v1350
    %1354 = vset.pattern.permute.xlu0 6
    %1355 = vperm.xlu0 %1354, %v1024
    %v1356 = vpop.permute.xlu0 %1355
    %1358 = vset.pattern.permute.xlu0 6
    %1359 = vperm.xlu0 %1358, %v1027
    %v1360 = vpop.permute.xlu0 %1359
    %1362 = vset.pattern.permute.xlu0 14
    %1363 = vperm.xlu0 %1362, %v1024
    %v1364 = vpop.permute.xlu0 %1363
    %1366 = vset.pattern.permute.xlu0 14
    %1367 = vperm.xlu0 %1366, %v1027
    %v1368 = vpop.permute.xlu0 %1367
    %v1370 = vsel %vm58, %v1356, %v1364
    %v1371 = vsel %vm58, %v1360, %v1368
    %v1372 = vperm.slane %v1038, 6
    %v1373 = vmul.f32 %v1352, %v1372
    %v1374 = vmul.f32 %v1353, %v1372
    %v1375 = vperm.slane %v1037, 7
    %v1376 = vmul.f32 %v1375, %v1047
    %v1377 = vmul.f32 %v1375, %v1048
    %v1378 = vmul.f32 %v1376, 1.442695
    %v1379 = vpow.pop %v1378
    %v1380 = vmul.f32 %v1377, 1.442695
    %v1381 = vpow.pop %v1380
    %1382 = vset.pattern.permute.xlu0 7
    %1383 = vperm.xlu0 %1382, %v1018
    %v1384 = vpop.permute.xlu0 %1383
    %1386 = vset.pattern.permute.xlu0 7
    %1387 = vperm.xlu0 %1386, %v1021
    %v1388 = vpop.permute.xlu0 %1387
    %1390 = vset.pattern.permute.xlu0 15
    %1391 = vperm.xlu0 %1390, %v1018
    %v1392 = vpop.permute.xlu0 %1391
    %1394 = vset.pattern.permute.xlu0 15
    %1395 = vperm.xlu0 %1394, %v1021
    %v1396 = vpop.permute.xlu0 %1395
    %v1398 = vsel %vm58, %v1384, %v1392
    %v1399 = vsel %vm58, %v1388, %v1396
    %1400 = vset.pattern.permute.xlu0 7
    %1401 = vperm.xlu0 %1400, %v1024
    %v1402 = vpop.permute.xlu0 %1401
    %1404 = vset.pattern.permute.xlu0 7
    %1405 = vperm.xlu0 %1404, %v1027
    %v1406 = vpop.permute.xlu0 %1405
    %1408 = vset.pattern.permute.xlu0 15
    %1409 = vperm.xlu0 %1408, %v1024
    %v1410 = vpop.permute.xlu0 %1409
    %1412 = vset.pattern.permute.xlu0 15
    %1413 = vperm.xlu0 %1412, %v1027
    %v1414 = vpop.permute.xlu0 %1413
    %v1416 = vsel %vm58, %v1402, %v1410
    %v1417 = vsel %vm58, %v1406, %v1414
    %v1418 = vperm.slane %v1038, 7
    %v1419 = vmul.f32 %v1398, %v1418
    %v1420 = vmul.f32 %v1399, %v1418
    %v1421 = vmul.f32 %v1379, 0.0
    %v1422 = vmul.f32 %v1381, 0.0
    %v1423 = vadd.f32 %v1421, %v1419
    %v1424 = vadd.f32 %v1422, %v1420
    %v1425 = vmul.f32 %v1416, %v1423
    %v1426 = vmul.f32 %v1417, %v1424
    %v1427 = vadd.f32 %v1425, %v1426
    %v1428 = vrot.slane %v1427, 4
    %v1429 = vadd.f32 %v1427, %v1428
    %v1430 = vrot.slane %v1429, 2
    %v1431 = vadd.f32 %v1429, %v1430
    %v1432 = vrot.slane %v1431, 1
    %v1433 = vadd.f32 %v1431, %v1432
    %v1434 = vmul.f32 %v1333, %v1423
    %v1435 = vmul.f32 %v1335, %v1424
    %v1436 = vadd.f32 %v1434, %v1373
    %v1437 = vadd.f32 %v1435, %v1374
    %v1438 = vmul.f32 %v1370, %v1436
    %v1439 = vmul.f32 %v1371, %v1437
    %v1440 = vadd.f32 %v1438, %v1439
    %v1441 = vrot.slane %v1440, 4
    %v1442 = vadd.f32 %v1440, %v1441
    %v1443 = vrot.slane %v1442, 2
    %v1444 = vadd.f32 %v1442, %v1443
    %v1445 = vrot.slane %v1444, 1
    %v1446 = vadd.f32 %v1444, %v1445
    %v1447 = vmul.f32 %v1287, %v1436
    %v1448 = vmul.f32 %v1289, %v1437
    %v1449 = vadd.f32 %v1447, %v1327
    %v1450 = vadd.f32 %v1448, %v1328
    %v1451 = vmul.f32 %v1324, %v1449
    %v1452 = vmul.f32 %v1325, %v1450
    %v1453 = vadd.f32 %v1451, %v1452
    %v1454 = vrot.slane %v1453, 4
    %v1455 = vadd.f32 %v1453, %v1454
    %v1456 = vrot.slane %v1455, 2
    %v1457 = vadd.f32 %v1455, %v1456
    %v1458 = vrot.slane %v1457, 1
    %v1459 = vadd.f32 %v1457, %v1458
    %v1460 = vmul.f32 %v1241, %v1449
    %v1461 = vmul.f32 %v1243, %v1450
    %v1462 = vadd.f32 %v1460, %v1281
    %v1463 = vadd.f32 %v1461, %v1282
    %v1464 = vmul.f32 %v1278, %v1462
    %v1465 = vmul.f32 %v1279, %v1463
    %v1466 = vadd.f32 %v1464, %v1465
    %v1467 = vrot.slane %v1466, 4
    %v1468 = vadd.f32 %v1466, %v1467
    %v1469 = vrot.slane %v1468, 2
    %v1470 = vadd.f32 %v1468, %v1469
    %v1471 = vrot.slane %v1470, 1
    %v1472 = vadd.f32 %v1470, %v1471
    %v1473 = vmul.f32 %v1195, %v1462
    %v1474 = vmul.f32 %v1197, %v1463
    %v1475 = vadd.f32 %v1473, %v1235
    %v1476 = vadd.f32 %v1474, %v1236
    %v1477 = vmul.f32 %v1232, %v1475
    %v1478 = vmul.f32 %v1233, %v1476
    %v1479 = vadd.f32 %v1477, %v1478
    %v1480 = vrot.slane %v1479, 4
    %v1481 = vadd.f32 %v1479, %v1480
    %v1482 = vrot.slane %v1481, 2
    %v1483 = vadd.f32 %v1481, %v1482
    %v1484 = vrot.slane %v1483, 1
    %v1485 = vadd.f32 %v1483, %v1484
    %v1486 = vmul.f32 %v1149, %v1475
    %v1487 = vmul.f32 %v1151, %v1476
    %v1488 = vadd.f32 %v1486, %v1189
    %v1489 = vadd.f32 %v1487, %v1190
    %v1490 = vmul.f32 %v1186, %v1488
    %v1491 = vmul.f32 %v1187, %v1489
    %v1492 = vadd.f32 %v1490, %v1491
    %v1493 = vrot.slane %v1492, 4
    %v1494 = vadd.f32 %v1492, %v1493
    %v1495 = vrot.slane %v1494, 2
    %v1496 = vadd.f32 %v1494, %v1495
    %v1497 = vrot.slane %v1496, 1
    %v1498 = vadd.f32 %v1496, %v1497
    %v1499 = vmul.f32 %v1103, %v1488
    %v1500 = vmul.f32 %v1105, %v1489
    %v1501 = vadd.f32 %v1499, %v1143
    %v1502 = vadd.f32 %v1500, %v1144
    %v1503 = vmul.f32 %v1140, %v1501
    %v1504 = vmul.f32 %v1141, %v1502
    %v1505 = vadd.f32 %v1503, %v1504
    %v1506 = vrot.slane %v1505, 4
    %v1507 = vadd.f32 %v1505, %v1506
    %v1508 = vrot.slane %v1507, 2
    %v1509 = vadd.f32 %v1507, %v1508
    %v1510 = vrot.slane %v1509, 1
    %v1511 = vadd.f32 %v1509, %v1510
    %v1512 = vmul.f32 %v1053, %v1501
    %v1513 = vmul.f32 %v1055, %v1502
    %v1514 = vadd.f32 %v1512, %v1097
    %v1515 = vadd.f32 %v1513, %v1098
    %v1516 = vmul.f32 %v1094, %v1514
    %v1517 = vmul.f32 %v1095, %v1515
    %v1518 = vadd.f32 %v1516, %v1517
    %v1519 = vrot.slane %v1518, 4
    %v1520 = vadd.f32 %v1518, %v1519
    %v1521 = vrot.slane %v1520, 2
    %v1522 = vadd.f32 %v1520, %v1521
    %v1523 = vrot.slane %v1522, 1
    %v1524 = vadd.f32 %v1522, %v1523
    %v1525 = vsel %vm793, %v1524, %v1511
    %v1526 = vsel %vm795, %v1525, %v1498
    %v1527 = vsel %vm797, %v1526, %v1485
    %v1528 = vsel %vm799, %v1527, %v1472
    %v1529 = vsel %vm801, %v1528, %v1459
    %v1530 = vsel %vm803, %v1529, %v1446
    %v1531 = vsel %vm805, %v1530, %v1433
    %1533 = vrot.lane.b32.xlu0 %v819, 64
    %v1534 = vpop.permute.xlu0 %1533
    %v1536 = vsel %vm58, %v819, %v1534
    %v1537 = vperm.slane %v1536, 0
    %v1538 = vmul.f32 %v1537, %v1032
    %v1539 = vadd.f32 %v1531, %v1538
    %v1540 = vmul.f32 %v1539, %v79
    %v1541 = vld [vmem:[%s3] sm:$0xff]
    %v1542 = vld [vmem:[%s3 + $0x8] sm:$0xff]
    %v1543 = vld [vmem:[%s3 + $0x10] sm:$0xff]
    %v1544 = vld [vmem:[%s3 + $0x18] sm:$0xff]
    %v1545 = vld [vmem:[%s3 + $0x20] sm:$0xff]
    %v1546 = vld [vmem:[%s3 + $0x28] sm:$0xff]
    %v1547 = vld [vmem:[%s3 + $0x30] sm:$0xff]
    %v1548 = vld [vmem:[%s3 + $0x38] sm:$0xff]
    %v1549 = vadd.f32 %v815, %v1540
    %1551 = vrot.lane.b32.xlu0 %v1549, 64
    %v1552 = vpop.permute.xlu0 %1551
    %v1553 = vsel %vm58, %v1549, 0
    %v1555 = vsel %vm58, %v1552, 0
    %1557 = vmatpush.msra.mxu0 0.0
    %1558 = vmatpush.msra.mxu0 0.0
    %1559 = vmatpush.msra.mxu0 0.0
    %1560 = vmatpush.msra.mxu0 0.0
    %1561 = vmatpush.msra.mxu0 0.0
    %1562 = vmatpush.msra.mxu0 0.0
    %1563 = vmatpush.msra.mxu0 0.0
    %1564 = vmatpush.msra.mxu0 0.0
    %1565 = vmatpush.msra.mxu0 %v1548
    %1566 = vmatpush.msra.mxu0 %v1547
    %1567 = vmatpush.msra.mxu0 %v1546
    %1568 = vmatpush.msra.mxu0 %v1545
    %1569 = vmatpush.msra.mxu0 %v1544
    %1570 = vmatpush.msra.mxu0 %v1543
    %1571 = vmatpush.msra.mxu0 %v1542
    %1572 = vmatpush.msra.mxu0 %v1541
    %1573 = vmatmul.f32.gmra.mxu0 %v1553
    %v1574 = vpop.f32.mrf.mxu0
    %v1575 = vadd.f32 0.0, %v1574
    %1576 = vmatmul.f32.gmra.mxu0 %v1555
    %v1577 = vpop.f32.mrf.mxu0
    %v1578 = vadd.f32 0.0, %v1577
    %1579 = vdwg.mxu0
    %1580 = vst.msk [vmem:[#allocation2] sm:$0xff] %vm24, %v1575
    %1581 = vst.msk [vmem:[#allocation2 + $0x8] sm:$0xff] %vm24, %v1578
    // Predicated region
    $region18: #{tpu_custom_call.1} parent=1 // pred_check
      _
    $region19: #{tpu_custom_call.1} parent=1 // pred_check_branch
      %1583 = sbr.rel (0) target = $region21
    $region20: #{tpu_custom_call.1} parent=1 // pred_region
      %1585 = vsyncadd [#allocation3], 0
      %s1586 = sshll.u32 [#allocation2], 4
      %s1587 = int_to_ptr.vmem [resolvable:$true] %s1586
      %s1588 = sshll.u32 %s4, 4
      %s1589 = int_to_ptr.hbm [resolvable:$true] %s1588
      %1594 = dma.vmem_to_hbm [thread:$0]  %s1587, 256, %s1589, [#allocation3], 128, 128, 8
    $region21: #{tpu_custom_call.1} parent=1 // pred_fallthru
      _
    // Predicated region
    $region22: #{tpu_custom_call.1} parent=1 // pred_check
      _
    $region23: #{tpu_custom_call.1} parent=1 // pred_check_branch
      %1596 = sbr.rel (0) target = $region25
    $region24: #{tpu_custom_call.1} parent=1 // pred_region
      %1598 = dma.done [#allocation3], 256
    $region25: #{tpu_custom_call.1} parent=1 // pred_fallthru
      _
    %1599 = vsyncpa [#allocation3], 1

</llo_original>
